<compile_context>
chip_gen: v7x
topology: tpu7x:2x2x1
jax: 0.10.0
libtpu: 0.0.40
codegen_flags: <defaults>
</compile_context>

<pallas_src>
import functools

import jax
import jax.numpy as jnp
from jax.experimental import pallas as pl
from jax.experimental.pallas import tpu as pltpu

ALPHA = 0.2  # APPNPConv(1, 0.2)


def _round_up(x: int, m: int) -> int:
    return ((x + m - 1) // m) * m


# ------------------------------------------------------------------ kernels ---

def cast_deg_kernel(adj_ref, adj_i8_ref, outdeg_ref):
    """Single pass over the f32 adjacency: write the int8 copy and accumulate the
    column sums (out-degree per source node) in f32."""
    r = pl.program_id(1)                                  # row-tile index (reduction axis)
    a = adj_ref[...]                                      # (tm, tk) f32, values in {0, 1}
    adj_i8_ref[...] = a.astype(jnp.int8)                  # lossless 1-byte storage

    @pl.when(r == 0)
    def _():
        outdeg_ref[...] = jnp.zeros_like(outdeg_ref)

    outdeg_ref[...] += jnp.sum(a, axis=0, keepdims=True)  # (1, tk) partial column sums (f32)


def prop_kernel(adj_ref, fsrc_ref, fdst_ref, w_ref, b_ref, onorm_ref,
                out_ref, acc_ref, deg_ref):
    """One (dst-tile, src-tile) step of
         out = (1-a) * D_in^{-1/2} * (A @ (D_out^{-1/2} * ReLU(f @ W + b))) + a * ReLU(f @ W + b)
    Linear+ReLU is recomputed in-kernel (F, C tiny); the in-degree is accumulated from the
    adjacency tiles already resident in VMEM."""
    k = pl.program_id(1)

    @pl.when(k == 0)
    def _():
        acc_ref[...] = jnp.zeros_like(acc_ref)
        deg_ref[...] = jnp.zeros_like(deg_ref)

    adj = adj_ref[...].astype(jnp.bfloat16)               # int8 {0,1} -> bf16 (exact), VALU slack

    # xs for this src chunk: ReLU(feat @ W^T + b) * D_out^{-1/2}; dropout(training=False) = id.
    xs = jnp.dot(fsrc_ref[...], w_ref[...], preferred_element_type=jnp.float32) + b_ref[...]
    xs = jnp.maximum(xs, 0.0) * onorm_ref[...]

    # Native bf16 x bf16 MXU path, f32 accumulation in VMEM scratch.
    acc_ref[...] += jnp.dot(adj, xs.astype(jnp.bfloat16), preferred_element_type=jnp.float32)

    # In-degree partial row sums (exact: elements are 0/1, accumulation in f32).
    deg_ref[...] += jnp.sum(adj, axis=-1, keepdims=True, dtype=jnp.float32)

    @pl.when(k == pl.num_programs(1) - 1)
    def _():
        x = jnp.dot(fdst_ref[...], w_ref[...], preferred_element_type=jnp.float32) + b_ref[...]
        x = jnp.maximum(x, 0.0)
        in_scale = (1.0 - ALPHA) * jax.lax.rsqrt(jnp.maximum(deg_ref[...], 1.0))
        out_ref[...] = acc_ref[...] * in_scale + ALPHA * x


# ------------------------------------------------------------------ wrapper ---

@functools.partial(jax.jit, static_argnames=("tm", "tk"))
def appnp_forward(adj, features, w_t, b, *, tm=256, tk=256):
    """adj: (N, N) f32 with adj[dst, src] in {0, 1}; features: (N, F) f32;
    w_t: (F, C) f32 (pre-transposed nn.Linear weight); b: (1, C) f32 -> (N, C) f32."""
    N, F = features.shape
    C = w_t.shape[1]

    # Pad node dim to a multiple of 128 and make tiles divide it (padding is semantics-preserving:
    # padded src columns are all-zero, padded dst rows are sliced off).
    Np = _round_up(max(N, 128), 128)
    tm = min(int(tm), Np)
    tk = min(int(tk), Np)
    if tm % 128 != 0 or Np % tm != 0:
        tm = 128
    if tk % 128 != 0 or Np % tk != 0:
        tk = 128
    if Np != N:
        adj = jnp.pad(adj, ((0, Np - N), (0, Np - N)))
        features = jnp.pad(features, ((0, Np - N), (0, 0)))

    cparams = pltpu.CompilerParams(
        dimension_semantics=("parallel", "arbitrary"),
        vmem_limit_bytes=32 * 1024 * 1024,   # tiles are (tm, tk)-bounded -> safe on v7x 64 MiB too
    )

    # --- pass 1: fused f32 -> int8 cast + out-degree column sums (single read of adj) ---
    adj_i8, out_deg = pl.pallas_call(
        cast_deg_kernel,
        out_shape=(
            jax.ShapeDtypeStruct((Np, Np), jnp.int8),
            jax.ShapeDtypeStruct((1, Np), jnp.float32),
        ),
        grid_spec=pltpu.PrefetchScalarGridSpec(
            num_scalar_prefetch=0,
            grid=(Np // tk, Np // tm),            # (col tiles, row tiles); rows innermost = reduction
            in_specs=[pl.BlockSpec((tm, tk), lambda c, r: (r, c))],
            out_specs=[
                pl.BlockSpec((tm, tk), lambda c, r: (r, c)),
                pl.BlockSpec((1, tk), lambda c, r: (0, c)),
            ],
        ),
        compiler_params=cparams,
    )(adj)

    # Tiny per-node epilogue in XLA: D_out^{-1/2}, clamped at 1 (matches DGL).
    out_norm = jax.lax.rsqrt(jnp.maximum(out_deg, 1.0)).reshape(Np, 1)

    # --- pass 2: fused Linear + ReLU + APPNP propagation, K-tiled over source nodes ---
    out = pl.pallas_call(
        prop_kernel,
        out_shape=jax.ShapeDtypeStruct((Np, C), jnp.float32),
        grid_spec=pltpu.PrefetchScalarGridSpec(
            num_scalar_prefetch=0,
            grid=(Np // tm, Np // tk),                         # (dst tiles, src tiles)
            in_specs=[
                pl.BlockSpec((tm, tk), lambda i, k: (i, k)),   # adjacency tile (int8)
                pl.BlockSpec((tk, F), lambda i, k: (k, 0)),    # features of src chunk
                pl.BlockSpec((tm, F), lambda i, k: (i, 0)),    # features of dst strip
                pl.BlockSpec((F, C), lambda i, k: (0, 0)),     # W^T (resident)
                pl.BlockSpec((1, C), lambda i, k: (0, 0)),     # bias (resident)
                pl.BlockSpec((tk, 1), lambda i, k: (k, 0)),    # D_out^{-1/2} of src chunk
            ],
            out_specs=pl.BlockSpec((tm, C), lambda i, k: (i, 0)),
            scratch_shapes=[
                pltpu.VMEM((tm, C), jnp.float32),              # A @ xs accumulator
                pltpu.VMEM((tm, 1), jnp.float32),              # in-degree accumulator
            ],
        ),
        compiler_params=cparams,
    )(adj_i8, features, features, w_t, b, out_norm)

    return out[:N]


# ---------------------------------------------------------------- reference ---

def reference_forward(adj, features, w_t, b):
    hp = jax.lax.Precision.HIGHEST
    x = jnp.maximum(jnp.dot(features, w_t, precision=hp) + b, 0.0)
    out_deg = jnp.clip(adj.sum(axis=0), 1.0, None)
    in_deg = jnp.clip(adj.sum(axis=1), 1.0, None)
    h = jnp.dot(adj * (out_deg ** -0.5)[None, :], x, precision=hp) * (in_deg ** -0.5)[:, None]
    return (1.0 - ALPHA) * h + ALPHA * x


if __name__ == "__main__":
    # Small deterministic problem: N=256 nodes, in_feats=32, num_classes=8 (2x2 tile grid).
    N, F, C = 256, 32, 8
    key = jax.random.PRNGKey(0)
    k_feat, k_w, k_b, k_adj = jax.random.split(key, 4)

    features = jax.random.normal(k_feat, (N, F), dtype=jnp.float32)

    # nn.Linear(in_feats, num_classes): weight (C, F), bias (C,)
    lin_w = jax.random.normal(k_w, (C, F), dtype=jnp.float32) * (1.0 / jnp.sqrt(F))
    lin_b = jax.random.normal(k_b, (C,), dtype=jnp.float32) * 0.1
    w_t = lin_w.T                      # (F, C) — pre-transposed for the kernel
    b = lin_b.reshape(1, C)            # (1, C)

    # Random directed graph adjacency (no self loops added), adj[dst, src] in {0, 1}.
    adj = (jax.random.uniform(k_adj, (N, N)) < 0.05).astype(jnp.float32)

    out = appnp_forward(adj, features, w_t, b, tm=128, tk=128)
    out = jax.block_until_ready(out)

    ref = reference_forward(adj, features, w_t, b)
    assert out.shape == (N, C)
    # xs is fed to the MXU in bf16 (adjacency is exact, accumulation is f32) -> loosened tolerance.
    assert jnp.allclose(out, ref, atol=3e-2, rtol=2e-2), "Pallas kernel mismatch vs reference"

    print("KERNEL_OK")
</pallas_src>

<mosaic_0001>
module attributes {stable_mosaic.version = 11 : i64} {
  func.func @cast_deg_kernel(%arg0: i32, %arg1: i32, %arg2: memref<128x128xf32, #tpu.memory_space<vmem>>, %arg3: memref<128x128xi8, #tpu.memory_space<vmem>>, %arg4: memref<1x128xf32, #tpu.memory_space<vmem>>) attributes {dimension_semantics = [#tpu.dimension_semantics<parallel>, #tpu.dimension_semantics<arbitrary>], iteration_bounds = array<i64: 2, 2>, scalar_prefetch = 0 : i64, scratch_operands = 0 : i64, tpu.core_type = #tpu.core_type<tc>, window_params = [{transform_indices = @transform_0, window_bounds = array<i64: 128, 128>}, {transform_indices = @transform_1, window_bounds = array<i64: 128, 128>}, {transform_indices = @transform_2, window_bounds = array<i64: 1, 128>}]} {
    %c0 = arith.constant 0 : index
    %c0_0 = arith.constant 0 : index
    %0 = vector.load %arg2[%c0, %c0_0] : memref<128x128xf32, #tpu.memory_space<vmem>>, vector<128x128xf32>
    %1 = arith.fptosi %0 : vector<128x128xf32> to vector<128x128xi8>
    %c0_1 = arith.constant 0 : index
    %c0_2 = arith.constant 0 : index
    %2 = vector.load %arg3[%c0_1, %c0_2] : memref<128x128xi8, #tpu.memory_space<vmem>>, vector<128x128xi8>
    tpu.vector_store %arg3[%c0_1, %c0_2], %1 {strides = array<i32>} : memref<128x128xi8, #tpu.memory_space<vmem>>, vector<128x128xi8>,
    %c0_i32 = arith.constant 0 : i32
    %3 = arith.cmpi eq, %arg1, %c0_i32 : i32
    %4 = arith.extui %3 : i1 to i32
    %c0_i32_3 = arith.constant 0 : i32
    %5 = arith.cmpi ne, %4, %c0_i32_3 : i32
    scf.if %5 {
      %cst_8 = arith.constant 0.000000e+00 : f32
      %11 = vector.broadcast %cst_8 : f32 to vector<1x128xf32>
      %c0_9 = arith.constant 0 : index
      %c0_10 = arith.constant 0 : index
      %12 = vector.load %arg4[%c0_9, %c0_10] : memref<1x128xf32, #tpu.memory_space<vmem>>, vector<1x128xf32>
      tpu.vector_store %arg4[%c0_9, %c0_10], %11 {strides = array<i32>} : memref<1x128xf32, #tpu.memory_space<vmem>>, vector<1x128xf32>,
    } else {
    }
    %c0_4 = arith.constant 0 : index
    %c0_5 = arith.constant 0 : index
    %6 = vector.load %arg4[%c0_4, %c0_5] : memref<1x128xf32, #tpu.memory_space<vmem>>, vector<1x128xf32>
    %cst = arith.constant dense<0.000000e+00> : vector<128xf32>
    %7 = vector.multi_reduction <add>, %0, %cst [0] : vector<128x128xf32> to vector<128xf32>
    %8 = vector.shape_cast %7 : vector<128xf32> to vector<1x128xf32>
    %9 = arith.addf %6, %8 : vector<1x128xf32>
    %c0_6 = arith.constant 0 : index
    %c0_7 = arith.constant 0 : index
    %10 = vector.load %arg4[%c0_6, %c0_7] : memref<1x128xf32, #tpu.memory_space<vmem>>, vector<1x128xf32>
    tpu.vector_store %arg4[%c0_6, %c0_7], %9 {strides = array<i32>} : memref<1x128xf32, #tpu.memory_space<vmem>>, vector<1x128xf32>,
    return
  }
  func.func @transform_0(%arg0: i32, %arg1: i32) -> (i32, i32) {
    %c0_i32 = arith.constant 0 : i32
    return %arg1, %arg0 : i32, i32
  }
  func.func @transform_1(%arg0: i32, %arg1: i32) -> (i32, i32) {
    %c0_i32 = arith.constant 0 : i32
    return %arg1, %arg0 : i32, i32
  }
  func.func @transform_2(%arg0: i32, %arg1: i32) -> (i32, i32) {
    %c0_i32 = arith.constant 0 : i32
    %c0_i32_0 = arith.constant 0 : i32
    return %c0_i32, %arg0 : i32, i32
  }
}

module attributes {stable_mosaic.version = 11 : i64} {
  func.func @prop_kernel(%arg0: i32, %arg1: i32, %arg2: memref<128x128xi8, #tpu.memory_space<vmem>>, %arg3: memref<128x32xf32, #tpu.memory_space<vmem>>, %arg4: memref<128x32xf32, #tpu.memory_space<vmem>>, %arg5: memref<32x8xf32, #tpu.memory_space<vmem>>, %arg6: memref<1x8xf32, #tpu.memory_space<vmem>>, %arg7: memref<128x1xf32, #tpu.memory_space<vmem>>, %arg8: memref<128x8xf32, #tpu.memory_space<vmem>>, %arg9: memref<128x8xf32, #tpu.memory_space<vmem>>, %arg10: memref<128x1xf32, #tpu.memory_space<vmem>>) attributes {dimension_semantics = [#tpu.dimension_semantics<parallel>, #tpu.dimension_semantics<arbitrary>], iteration_bounds = array<i64: 2, 2>, scalar_prefetch = 0 : i64, scratch_operands = 2 : i64, tpu.core_type = #tpu.core_type<tc>, window_params = [{transform_indices = @transform_0, window_bounds = array<i64: 128, 128>}, {transform_indices = @transform_1, window_bounds = array<i64: 128, 32>}, {transform_indices = @transform_2, window_bounds = array<i64: 128, 32>}, {pipeline_mode = #tpu.pipeline_mode<synchronous>, transform_indices = @transform_3, window_bounds = array<i64: 32, 8>}, {pipeline_mode = #tpu.pipeline_mode<synchronous>, transform_indices = @transform_4, window_bounds = array<i64: 1, 8>}, {transform_indices = @transform_5, window_bounds = array<i64: 128, 1>}, {transform_indices = @transform_6, window_bounds = array<i64: 128, 8>}]} {
    %c0_i32 = arith.constant 0 : i32
    %0 = arith.cmpi eq, %arg1, %c0_i32 : i32
    %1 = arith.extui %0 : i1 to i32
    %c0_i32_0 = arith.constant 0 : i32
    %2 = arith.cmpi ne, %1, %c0_i32_0 : i32
    scf.if %2 {
      %cst_22 = arith.constant 0.000000e+00 : f32
      %30 = vector.broadcast %cst_22 : f32 to vector<128x8xf32>
      %c0_23 = arith.constant 0 : index
      %c0_24 = arith.constant 0 : index
      %31 = vector.load %arg9[%c0_23, %c0_24] : memref<128x8xf32, #tpu.memory_space<vmem>>, vector<128x8xf32>
      tpu.vector_store %arg9[%c0_23, %c0_24], %30 {strides = array<i32>} : memref<128x8xf32, #tpu.memory_space<vmem>>, vector<128x8xf32>,
      %cst_25 = arith.constant 0.000000e+00 : f32
      %32 = vector.broadcast %cst_25 : f32 to vector<128x1xf32>
      %c0_26 = arith.constant 0 : index
      %c0_27 = arith.constant 0 : index
      %33 = vector.load %arg10[%c0_26, %c0_27] : memref<128x1xf32, #tpu.memory_space<vmem>>, vector<128x1xf32>
      tpu.vector_store %arg10[%c0_26, %c0_27], %32 {strides = array<i32>} : memref<128x1xf32, #tpu.memory_space<vmem>>, vector<128x1xf32>,
    } else {
    }
    %c0 = arith.constant 0 : index
    %c0_1 = arith.constant 0 : index
    %3 = vector.load %arg2[%c0, %c0_1] : memref<128x128xi8, #tpu.memory_space<vmem>>, vector<128x128xi8>
    %4 = arith.sitofp %3 : vector<128x128xi8> to vector<128x128xbf16>
    %c0_2 = arith.constant 0 : index
    %c0_3 = arith.constant 0 : index
    %5 = vector.load %arg3[%c0_2, %c0_3] : memref<128x32xf32, #tpu.memory_space<vmem>>, vector<128x32xf32>
    %c0_4 = arith.constant 0 : index
    %c0_5 = arith.constant 0 : index
    %6 = vector.load %arg5[%c0_4, %c0_5] : memref<32x8xf32, #tpu.memory_space<vmem>>, vector<32x8xf32>
    %cst = arith.constant dense<0.000000e+00> : vector<128x8xf32>
    %7 = tpu.matmul %5, %6, %cst {dimension_numbers = #tpu.dot_dimension_numbers<[1], [0], [0], [1], [0, 0, 1, 1], [], []>} : vector<128x32xf32>, vector<32x8xf32>, vector<128x8xf32> -> vector<128x8xf32>
    %c0_6 = arith.constant 0 : index
    %c0_7 = arith.constant 0 : index
    %8 = vector.load %arg6[%c0_6, %c0_7] : memref<1x8xf32, #tpu.memory_space<vmem>>, vector<1x8xf32>
    %9 = vector.broadcast %8 : vector<1x8xf32> to vector<128x8xf32>
    %10 = arith.addf %7, %9 : vector<128x8xf32>
    %cst_8 = arith.constant 0.000000e+00 : f32
    %11 = vector.broadcast %cst_8 : f32 to vector<128x8xf32>
    %12 = arith.maximumf %10, %11 : vector<128x8xf32>
    %c0_9 = arith.constant 0 : index
    %c0_10 = arith.constant 0 : index
    %13 = vector.load %arg7[%c0_9, %c0_10] : memref<128x1xf32, #tpu.memory_space<vmem>>, vector<128x1xf32>
    %14 = vector.broadcast %13 : vector<128x1xf32> to vector<128x8xf32>
    %15 = arith.mulf %12, %14 : vector<128x8xf32>
    %c0_11 = arith.constant 0 : index
    %c0_12 = arith.constant 0 : index
    %16 = vector.load %arg9[%c0_11, %c0_12] : memref<128x8xf32, #tpu.memory_space<vmem>>, vector<128x8xf32>
    %17 = arith.truncf %15 : vector<128x8xf32> to vector<128x8xbf16>
    %cst_13 = arith.constant dense<0.000000e+00> : vector<128x8xf32>
    %18 = tpu.matmul %4, %17, %cst_13 {dimension_numbers = #tpu.dot_dimension_numbers<[1], [0], [0], [1], [0, 0, 1, 1], [], []>} : vector<128x128xbf16>, vector<128x8xbf16>, vector<128x8xf32> -> vector<128x8xf32>
    %19 = arith.addf %16, %18 : vector<128x8xf32>
    %c0_14 = arith.constant 0 : index
    %c0_15 = arith.constant 0 : index
    %20 = vector.load %arg9[%c0_14, %c0_15] : memref<128x8xf32, #tpu.memory_space<vmem>>, vector<128x8xf32>
    tpu.vector_store %arg9[%c0_14, %c0_15], %19 {strides = array<i32>} : memref<128x8xf32, #tpu.memory_space<vmem>>, vector<128x8xf32>,
    %c0_16 = arith.constant 0 : index
    %c0_17 = arith.constant 0 : index
    %21 = vector.load %arg10[%c0_16, %c0_17] : memref<128x1xf32, #tpu.memory_space<vmem>>, vector<128x1xf32>
    %22 = arith.extf %4 : vector<128x128xbf16> to vector<128x128xf32>
    %cst_18 = arith.constant dense<0.000000e+00> : vector<128xf32>
    %23 = vector.multi_reduction <add>, %22, %cst_18 [1] : vector<128x128xf32> to vector<128xf32>
    %24 = vector.shape_cast %23 : vector<128xf32> to vector<128x1xf32>
    %25 = arith.addf %21, %24 : vector<128x1xf32>
    %c0_19 = arith.constant 0 : index
    %c0_20 = arith.constant 0 : index
    %26 = vector.load %arg10[%c0_19, %c0_20] : memref<128x1xf32, #tpu.memory_space<vmem>>, vector<128x1xf32>
    tpu.vector_store %arg10[%c0_19, %c0_20], %25 {strides = array<i32>} : memref<128x1xf32, #tpu.memory_space<vmem>>, vector<128x1xf32>,
    %c1_i32 = arith.constant 1 : i32
    %27 = arith.cmpi eq, %arg1, %c1_i32 : i32
    %28 = arith.extui %27 : i1 to i32
    %c0_i32_21 = arith.constant 0 : i32
    %29 = arith.cmpi ne, %28, %c0_i32_21 : i32
    scf.if %29 {
      %c0_22 = arith.constant 0 : index
      %c0_23 = arith.constant 0 : index
      %30 = vector.load %arg4[%c0_22, %c0_23] : memref<128x32xf32, #tpu.memory_space<vmem>>, vector<128x32xf32>
      %c0_24 = arith.constant 0 : index
      %c0_25 = arith.constant 0 : index
      %31 = vector.load %arg5[%c0_24, %c0_25] : memref<32x8xf32, #tpu.memory_space<vmem>>, vector<32x8xf32>
      %cst_26 = arith.constant dense<0.000000e+00> : vector<128x8xf32>
      %32 = tpu.matmul %30, %31, %cst_26 {dimension_numbers = #tpu.dot_dimension_numbers<[1], [0], [0], [1], [0, 0, 1, 1], [], []>} : vector<128x32xf32>, vector<32x8xf32>, vector<128x8xf32> -> vector<128x8xf32>
      %c0_27 = arith.constant 0 : index
      %c0_28 = arith.constant 0 : index
      %33 = vector.load %arg6[%c0_27, %c0_28] : memref<1x8xf32, #tpu.memory_space<vmem>>, vector<1x8xf32>
      %34 = vector.broadcast %33 : vector<1x8xf32> to vector<128x8xf32>
      %35 = arith.addf %32, %34 : vector<128x8xf32>
      %cst_29 = arith.constant 0.000000e+00 : f32
      %36 = vector.broadcast %cst_29 : f32 to vector<128x8xf32>
      %37 = arith.maximumf %35, %36 : vector<128x8xf32>
      %c0_30 = arith.constant 0 : index
      %c0_31 = arith.constant 0 : index
      %38 = vector.load %arg10[%c0_30, %c0_31] : memref<128x1xf32, #tpu.memory_space<vmem>>, vector<128x1xf32>
      %cst_32 = arith.constant 1.000000e+00 : f32
      %39 = vector.broadcast %cst_32 : f32 to vector<128x1xf32>
      %40 = arith.maximumf %38, %39 : vector<128x1xf32>
      %41 = math.rsqrt %40 : vector<128x1xf32>
      %cst_33 = arith.constant 8.000000e-01 : f32
      %42 = vector.broadcast %cst_33 : f32 to vector<128x1xf32>
      %43 = arith.mulf %42, %41 : vector<128x1xf32>
      %c0_34 = arith.constant 0 : index
      %c0_35 = arith.constant 0 : index
      %44 = vector.load %arg9[%c0_34, %c0_35] : memref<128x8xf32, #tpu.memory_space<vmem>>, vector<128x8xf32>
      %45 = vector.broadcast %43 : vector<128x1xf32> to vector<128x8xf32>
      %46 = arith.mulf %44, %45 : vector<128x8xf32>
      %cst_36 = arith.constant 2.000000e-01 : f32
      %47 = vector.broadcast %cst_36 : f32 to vector<128x8xf32>
      %48 = arith.mulf %47, %37 : vector<128x8xf32>
      %49 = arith.addf %46, %48 : vector<128x8xf32>
      %c0_37 = arith.constant 0 : index
      %c0_38 = arith.constant 0 : index
      %50 = vector.load %arg8[%c0_37, %c0_38] : memref<128x8xf32, #tpu.memory_space<vmem>>, vector<128x8xf32>
      tpu.vector_store %arg8[%c0_37, %c0_38], %49 {strides = array<i32>} : memref<128x8xf32, #tpu.memory_space<vmem>>, vector<128x8xf32>,
    } else {
    }
    return
  }
  func.func @transform_0(%arg0: i32, %arg1: i32) -> (i32, i32) {
    %c0_i32 = arith.constant 0 : i32
    return %arg0, %arg1 : i32, i32
  }
  func.func @transform_1(%arg0: i32, %arg1: i32) -> (i32, i32) {
    %c0_i32 = arith.constant 0 : i32
    %c0_i32_0 = arith.constant 0 : i32
    return %arg1, %c0_i32 : i32, i32
  }
  func.func @transform_2(%arg0: i32, %arg1: i32) -> (i32, i32) {
    %c0_i32 = arith.constant 0 : i32
    %c0_i32_0 = arith.constant 0 : i32
    return %arg0, %c0_i32 : i32, i32
  }
  func.func @transform_3(%arg0: i32, %arg1: i32) -> (i32, i32) {
    %c0_i32 = arith.constant 0 : i32
    %c0_i32_0 = arith.constant 0 : i32
    %c0_i32_1 = arith.constant 0 : i32
    return %c0_i32, %c0_i32_0 : i32, i32
  }
  func.func @transform_4(%arg0: i32, %arg1: i32) -> (i32, i32) {
    %c0_i32 = arith.constant 0 : i32
    %c0_i32_0 = arith.constant 0 : i32
    %c0_i32_1 = arith.constant 0 : i32
    return %c0_i32, %c0_i32_0 : i32, i32
  }
  func.func @transform_5(%arg0: i32, %arg1: i32) -> (i32, i32) {
    %c0_i32 = arith.constant 0 : i32
    %c0_i32_0 = arith.constant 0 : i32
    return %arg1, %c0_i32 : i32, i32
  }
  func.func @transform_6(%arg0: i32, %arg1: i32) -> (i32, i32) {
    %c0_i32 = arith.constant 0 : i32
    %c0_i32_0 = arith.constant 0 : i32
    return %arg0, %c0_i32 : i32, i32
  }
}

</mosaic_0001>

<llo_original>
// kernel: appnp_forward.2
$region0: #{appnp_forward.2}
  #allocation0 [shape = 'u32[]', space=smem, size = 0x4, offset = 0x4, fixed_abs, tag = 'smem constant byte address 0x4 - core index']
  #allocation1 [shape = 'u32[144,128]{1,0:T(1,128)}', space=vmem, size = 0x12000, scoped, tag = 'internal scratch']
  %s0 = inlined_call_operand.hbm [shape: f32[256,256], index: 0, kind: input, shape index: {}]
  %s1 = inlined_call_operand.vmem [shape: s8[256,256], index: 1, kind: output, shape index: {0}]
  %s2 = inlined_call_operand.vmem [shape: f32[1,256], index: 2, kind: output, shape index: {1}]
  %3 = xla_tuple %s1, %s2
  %s4 = sld [smem:[#allocation0]]
  $region87: #{appnp_forward.2} parent=0
    _
  %s6 = ssub.s32 1, %s4
  %s7 = scalar_select 0, %s6, %s4
  $region1: #{appnp_forward.2} parent=0
    #allocation2 [shape = 'u8[131072]{0}', space=vmem, size = 0x20000, scoped, tag = 'input window, operand 0']
    #allocation3 [shape = 's32[2]{0}', space=sflag, size = 0x8, scoped, tag = 'scoped memory for appnp_forward.2']
    #allocation4 [shape = 'u8[32768]{0}', space=vmem, size = 0x8000, scoped, tag = 'output window, operand 0']
    %8 = vsyncpa [#allocation3], 0
    %s9 = scalar_lea.sflag [#allocation3], 1
    %10 = vsyncpa %s9, 0
    loop: start=0, step=1, limit=6
    $region2: #{appnp_forward.2} parent=1 // loop_pre_header
      _
    $region3: #{appnp_forward.2} parent=1 // loop_header
      %s12 = sphi 0, %s16
      %p13 = scmp.ge.s32.totalorder %s12, 6
      %s19 = sphi 0, %s31
      %s20 = sphi 0, %s27
      %s21 = sphi 0, %s19
      %s22 = sphi 0, %s20
      %s23 = sphi 0, %s21
      %s24 = sphi 0, %s22
      %s36 = sphi 0, %s38
      %s39 = sphi 0, %s36
      %s40 = sphi 0, %s39
      %s56 = sphi 0, %s40
      %s64 = sphi 0, %s66
      %s67 = sphi 0, %s64
      %s68 = sphi 0, %s67
      %s84 = sphi 0, %s68
      %s90 = sphi 0, %s92
      %s93 = sphi 0, %s90
      %s94 = sphi 0, %s93
      %s110 = sphi 0, %s94
    $region4: #{appnp_forward.2} parent=1 // loop_header_branch
      %15 = sbr.rel (%p13) target = $region8
    $region5: #{appnp_forward.2} parent=1 // loop_body
      %s17 = ssub.s32 %s12, 1
      %s18 = ssub.s32 %s12, 2
      %s25 = sadd.s32 1, %s20
      %p26 = scmp.ge.s32.totalorder %s25, 2
      %s27 = scalar_select %p26, 0, %s25
      %s28 = sadd.s32 1, %s19
      %s29 = scalar_select %p26, %s28, %s19
      %p30 = scmp.ge.s32.totalorder %s29, 2
      %s31 = scalar_select %p30, 0, %s29
      %s32 = ssub.s32 %s20, %s27
      %s33 = ssub.s32 %s19, %s31
      %s34 = sor.u32 %s32, %s33
      %p35 = scmp.eq.s32.totalorder %s34, 0
      %s37 = sadd.s32 %s36, 1
      %s38 = scalar_select %p35, %s36, %s37
      %p41 = pneg %p35
      %p42 = scmp.eq.s32.totalorder %s12, 3
      %p43 = por %p41, %p42
      %p44 = scmp.ne.s32.totalorder %s36, %s39
      %p45 = scmp.eq.s32.totalorder %s12, 0
      %p46 = por %p44, %p45
      %p47 = scmp.ne.s32.totalorder %s36, %s39
      %p48 = scmp.eq.s32.totalorder %s17, 3
      %p49 = por %p47, %p48
      %p50 = scmp.ne.s32.totalorder %s39, %s40
      %p51 = scmp.eq.s32.totalorder %s17, 0
      %p52 = por %p50, %p51
      %p53 = scmp.ne.s32.totalorder %s39, %s40
      %p54 = scmp.eq.s32.totalorder %s18, 3
      %p55 = por %p53, %p54
      %p57 = scmp.ne.s32.totalorder %s40, %s56
      %p58 = scmp.eq.s32.totalorder %s18, 0
      %p59 = por %p57, %p58
      %s60 = ssub.s32 %s20, %s27
      %s61 = ssub.s32 %s19, %s31
      %s62 = sor.u32 %s60, %s61
      %p63 = scmp.eq.s32.totalorder %s62, 0
      %s65 = sadd.s32 %s64, 1
      %s66 = scalar_select %p63, %s64, %s65
      %p69 = pneg %p63
      %p70 = scmp.eq.s32.totalorder %s12, 3
      %p71 = por %p69, %p70
      %p72 = scmp.ne.s32.totalorder %s64, %s67
      %p73 = scmp.eq.s32.totalorder %s12, 0
      %p74 = por %p72, %p73
      %p75 = scmp.ne.s32.totalorder %s64, %s67
      %p76 = scmp.eq.s32.totalorder %s17, 3
      %p77 = por %p75, %p76
      %p78 = scmp.ne.s32.totalorder %s67, %s68
      %p79 = scmp.eq.s32.totalorder %s17, 0
      %p80 = por %p78, %p79
      %p81 = scmp.ne.s32.totalorder %s67, %s68
      %p82 = scmp.eq.s32.totalorder %s18, 3
      %p83 = por %p81, %p82
      %p85 = scmp.ne.s32.totalorder %s68, %s84
      %p86 = scmp.eq.s32.totalorder %s18, 0
      %p87 = por %p85, %p86
      %s88 = ssub.s32 %s19, %s31
      %p89 = scmp.eq.s32.totalorder %s88, 0
      %s91 = sadd.s32 %s90, 1
      %s92 = scalar_select %p89, %s90, %s91
      %p95 = pneg %p89
      %p96 = scmp.eq.s32.totalorder %s12, 3
      %p97 = por %p95, %p96
      %p98 = scmp.ne.s32.totalorder %s90, %s93
      %p99 = scmp.eq.s32.totalorder %s12, 0
      %p100 = por %p98, %p99
      %p101 = scmp.ne.s32.totalorder %s90, %s93
      %p102 = scmp.eq.s32.totalorder %s17, 3
      %p103 = por %p101, %p102
      %p104 = scmp.ne.s32.totalorder %s93, %s94
      %p105 = scmp.eq.s32.totalorder %s17, 0
      %p106 = por %p104, %p105
      %p107 = scmp.ne.s32.totalorder %s93, %s94
      %p108 = scmp.eq.s32.totalorder %s18, 3
      %p109 = por %p107, %p108
      %p111 = scmp.ne.s32.totalorder %s94, %s110
      %p112 = scmp.eq.s32.totalorder %s18, 0
      %p113 = por %p111, %p112
      %p114 = scmp.le.s32.totalorder 1, %s12
      %p115 = scmp.lt.s32.totalorder %s12, 5
      %p116 = pnand %p114, %p115
      %p117 = pneg %p116
      // Predicated region
      $region9: #{appnp_forward.2} parent=5 // pred_check
        _
      $region10: #{appnp_forward.2} parent=5 // pred_check_branch
        %119 = sbr.rel (%p116) target = $region12
      $region11: #{appnp_forward.2} parent=5 // pred_region
        %s120 = ssub.s32 %s12, 1
      $region12: #{appnp_forward.2} parent=5 // pred_fallthru
        _
      %p121 = scmp.lt.s32.totalorder %s12, 4
      // Predicated region
      $region13: #{appnp_forward.2} parent=5 // pred_check
        %p122 = pneg %p121
      $region14: #{appnp_forward.2} parent=5 // pred_check_branch
        %124 = sbr.rel (%p122) target = $region16
      $region15: #{appnp_forward.2} parent=5 // pred_region
        // Predicated region
        $region17: #{appnp_forward.2} parent=15 // pred_check
          %p125 = pneg %p46
        $region18: #{appnp_forward.2} parent=15 // pred_check_branch
          %127 = sbr.rel (%p125) target = $region20
        $region19: #{appnp_forward.2} parent=15 // pred_region
          %s128 = sand.u32 %s36, 1
          %s129 = scalar_lea.sflag [#allocation3], %s128
          %s130 = sand.u32 %s36, 1
          %s131 = smul.addr %s130, 128
          %s132 = scalar_lea.vmem [#allocation2], %s131
          %s133 = smul.u32 16, %s20
          %s135 = ssub.s32 2048, 2048
          %136 = vsyncadd %s129, %s135
          %s137 = smul.addr %s133, 2
          %s138 = sadd.s32 %s19, %s137
          %s139 = smul.addr %s138, 128
          %s140 = scalar_lea.hbm %s0, %s139
          %s141 = sshll.u32 %s132, 4
          %s142 = int_to_ptr.vmem [resolvable:$true] %s141
          %147 = dma.hbm_to_vmem [thread:$0]  %s140, 2048, %s142, %s129, 256, 128, 8
        $region20: #{appnp_forward.2} parent=15 // pred_fallthru
          _
      $region16: #{appnp_forward.2} parent=5 // pred_fallthru
        _
      %p148 = scmp.le.s32.totalorder 1, %s12
      %p149 = scmp.lt.s32.totalorder %s12, 5
      %p150 = pnand %p148, %p149
      %p151 = pneg %p150
      // Predicated region
      $region21: #{appnp_forward.2} parent=5 // pred_check
        _
      $region22: #{appnp_forward.2} parent=5 // pred_check_branch
        %153 = sbr.rel (%p150) target = $region24
      $region23: #{appnp_forward.2} parent=5 // pred_region
        %s154 = ssub.s32 %s12, 1
        %s155 = sand.u32 %s39, 1
        %s156 = scalar_lea.sflag [#allocation3], %s155
        %s157 = sand.u32 %s39, 1
        %s158 = smul.addr %s157, 128
        %s159 = scalar_lea.vmem [#allocation2], %s158
        // Predicated region
        $region25: #{appnp_forward.2} parent=23 // pred_check
          %p160 = pneg %p52
        $region26: #{appnp_forward.2} parent=23 // pred_check_branch
          %162 = sbr.rel (%p160) target = $region28
        $region27: #{appnp_forward.2} parent=23 // pred_region
          %163 = dma.done %s156, 2048
        $region28: #{appnp_forward.2} parent=23 // pred_fallthru
          _
        %s164 = sand.u32 %s39, 1
        %s165 = scalar_lea.sflag [#allocation3], %s164
        %s166 = sand.u32 %s39, 1
        %s167 = smul.addr %s166, 128
        %s168 = scalar_lea.vmem [#allocation2], %s167
        %p169 = pneg %p52
        %p170 = pneg %p49
        %p171 = pneg %p80
        %p172 = pneg %p77
        %s173 = sand.u32 %s67, 1
        %s174 = sand.u32 %s67, 1
        %s175 = smul.addr %s174, 32
        %s176 = scalar_lea.vmem [#allocation4], %s175
        %p177 = pneg %p106
        %p178 = pneg %p103
        %p179 = scmp.lt.s32.totalorder %s21, 1
        %s180 = scalar_select %p179, %s21, 1
        %s181 = scalar_lea.vmem %s2, %s180
        %s182 = smul.u32 16, %s22
        %s183 = smul.u32 4, %s22
        %p184 = scmp.lt.s32.totalorder %s21, 1
        %s185 = scalar_select %p184, %s21, 1
        %s186 = scalar_lea.vmem %s2, %s185
        %v187 = vld [vmem:[%s159] sm:$0xff]
        %v188 = vld [vmem:[%s159 + $0x8] sm:$0xff]
        %v189 = vld [vmem:[%s159 + $0x10] sm:$0xff]
        %v190 = vld [vmem:[%s159 + $0x18] sm:$0xff]
        %v191 = vld [vmem:[%s159 + $0x20] sm:$0xff]
        %v192 = vld [vmem:[%s159 + $0x28] sm:$0xff]
        %v193 = vld [vmem:[%s159 + $0x30] sm:$0xff]
        %v194 = vld [vmem:[%s159 + $0x38] sm:$0xff]
        %v195 = vld [vmem:[%s159 + $0x40] sm:$0xff]
        %v196 = vld [vmem:[%s159 + $0x48] sm:$0xff]
        %v197 = vld [vmem:[%s159 + $0x50] sm:$0xff]
        %v198 = vld [vmem:[%s159 + $0x58] sm:$0xff]
        %v199 = vld [vmem:[%s159 + $0x60] sm:$0xff]
        %v200 = vld [vmem:[%s159 + $0x68] sm:$0xff]
        %v201 = vld [vmem:[%s159 + $0x70] sm:$0xff]
        %v202 = vld [vmem:[%s159 + $0x78] sm:$0xff]
        %v203 = vtrunc.f32 %v187
        %v204 = vtrunc.f32 %v188
        %v205 = vtrunc.f32 %v189
        %v206 = vtrunc.f32 %v190
        %v207 = vtrunc.f32 %v191
        %v208 = vtrunc.f32 %v192
        %v209 = vtrunc.f32 %v193
        %v210 = vtrunc.f32 %v194
        %v211 = vtrunc.f32 %v195
        %v212 = vtrunc.f32 %v196
        %v213 = vtrunc.f32 %v197
        %v214 = vtrunc.f32 %v198
        %v215 = vtrunc.f32 %v199
        %v216 = vtrunc.f32 %v200
        %v217 = vtrunc.f32 %v201
        %v218 = vtrunc.f32 %v202
        %v219 = vpack.c.f32.eXmY %v203, %v204, 312
        %v223 = vpack.c.f32.eXmY %v205, %v206, 312
        %v227 = vpack.c.b8 %v223, %v219
        %v229 = vpack.c.f32.eXmY %v207, %v208, 312
        %v233 = vpack.c.f32.eXmY %v209, %v210, 312
        %v237 = vpack.c.b8 %v233, %v229
        %v239 = vpack.c.f32.eXmY %v211, %v212, 312
        %v243 = vpack.c.f32.eXmY %v213, %v214, 312
        %v247 = vpack.c.b8 %v243, %v239
        %v249 = vpack.c.f32.eXmY %v215, %v216, 312
        %v253 = vpack.c.f32.eXmY %v217, %v218, 312
        %v257 = vpack.c.b8 %v253, %v249
        %259 = vst [vmem:[%s176] sm:$0xff] %v227
        %260 = vst [vmem:[%s176 + $0x8] sm:$0xff] %v237
        %261 = vst [vmem:[%s176 + $0x10] sm:$0xff] %v247
        %262 = vst [vmem:[%s176 + $0x18] sm:$0xff] %v257
        %p263 = scmp.eq.s32.totalorder %s22, 0
        // Predicated region
        $region29: #{appnp_forward.2} parent=23 // pred_check
          %p264 = pneg %p263
        $region30: #{appnp_forward.2} parent=23 // pred_check_branch
          %266 = sbr.rel (%p264) target = $region32
        $region31: #{appnp_forward.2} parent=23 // pred_region
          %267 = vst [vmem:[%s186] sm:$0x1] 0.0
        $region32: #{appnp_forward.2} parent=23 // pred_fallthru
          _
        %v268 = vld [vmem:[%s186] sm:$0x1]
        %v269 = vadd.f32 %v187, %v188
        %v270 = vadd.f32 %v269, %v189
        %v271 = vadd.f32 %v270, %v190
        %v272 = vadd.f32 %v271, %v191
        %v273 = vadd.f32 %v272, %v192
        %v274 = vadd.f32 %v273, %v193
        %v275 = vadd.f32 %v274, %v194
        %v276 = vadd.f32 %v275, %v195
        %v277 = vadd.f32 %v276, %v196
        %v278 = vadd.f32 %v277, %v197
        %v279 = vadd.f32 %v278, %v198
        %v280 = vadd.f32 %v279, %v199
        %v281 = vadd.f32 %v280, %v200
        %v282 = vadd.f32 %v281, %v201
        %v283 = vadd.f32 %v282, %v202
        %v284 = vrot.slane %v283, 4
        %v285 = vadd.f32 %v283, %v284
        %v286 = vrot.slane %v285, 2
        %v287 = vadd.f32 %v285, %v286
        %v288 = vrot.slane %v287, 1
        %v289 = vadd.f32 %v287, %v288
        %v290 = vadd.f32 %v268, %v289
        %291 = vst [vmem:[%s186] sm:$0x1] %v290
        %s292 = sand.u32 %s67, 1
        %s293 = sand.u32 %s67, 1
        %s294 = smul.addr %s293, 32
        %s295 = scalar_lea.vmem [#allocation4], %s294
        %p296 = scmp.lt.s32.totalorder %s21, 1
        %s297 = scalar_select %p296, %s21, 1
        %s298 = scalar_lea.vmem %s2, %s297
        // Predicated region
        $region33: #{appnp_forward.2} parent=23 // pred_check
          %p299 = pneg %p77
        $region34: #{appnp_forward.2} parent=23 // pred_check_branch
          %301 = sbr.rel (%p299) target = $region36
        $region35: #{appnp_forward.2} parent=23 // pred_region
          %s302 = smul.u32 4, %s22
          %s303 = smul.addr %s302, 2
          %s304 = sadd.s32 %s21, %s303
          %s305 = smul.addr %s304, 8
          %s306 = scalar_lea.vmem %s1, %s305
          // Predicated region
          $region37: #{appnp_forward.2} parent=35 // pred_check
            _
          $region38: #{appnp_forward.2} parent=35 // pred_check_branch
            %308 = sbr.rel (0) target = $region40
          $region39: #{appnp_forward.2} parent=35 // pred_region
            // Predicated region
            $region41: #{appnp_forward.2} parent=39 // pred_check
              _
            $region42: #{appnp_forward.2} parent=39 // pred_check_branch
              %310 = sbr.rel (0) target = $region44
            $region43: #{appnp_forward.2} parent=39 // pred_region
              // Predicated region
              $region56: #{appnp_forward.2} parent=43 // pred_check
                _
              $region57: #{appnp_forward.2} parent=43 // pred_check_branch
                %331 = sbr.rel (0) target = $region59
              $region58: #{appnp_forward.2} parent=43 // pred_region
                loop: start=0, step=1, limit=1
                $region60: #{appnp_forward.2} parent=58 // loop_pre_header
                  _
                $region61: #{appnp_forward.2} parent=58 // loop_header
                  %s333 = sphi 0, %s337
                  %p334 = scmp.ge.s32.totalorder %s333, 1
                  %s338 = sphi %s295, %s295
                  %s339 = sphi %s306, %s306
                $region62: #{appnp_forward.2} parent=58 // loop_header_branch
                  %336 = sbr.rel (%p334) target = $region66
                $region63: #{appnp_forward.2} parent=58 // loop_body
                  %v340 = vld [vmem:[%s338] sm:$0xff]
                  %341 = vst [vmem:[%s339] sm:$0xff] %v340
                  %v342 = vld [vmem:[%s338 + $0x8] sm:$0xff]
                  %343 = vst [vmem:[%s339 + $0x10] sm:$0xff] %v342
                  %v344 = vld [vmem:[%s338 + $0x10] sm:$0xff]
                  %345 = vst [vmem:[%s339 + $0x20] sm:$0xff] %v344
                  %v346 = vld [vmem:[%s338 + $0x18] sm:$0xff]
                  %347 = vst [vmem:[%s339 + $0x30] sm:$0xff] %v346
                $region64: #{appnp_forward.2} parent=58 // loop_footer
                  %s337 = sadd.s32 1, %s333
                $region65: #{appnp_forward.2} parent=58 // loop_footer_branch
                  %332 = sbr.rel target = $region61
                $region66: #{appnp_forward.2} parent=58 // loop_exit
                  _
              $region59: #{appnp_forward.2} parent=43 // pred_fallthru
                _
              // Predicated region
              $region67: #{appnp_forward.2} parent=43 // pred_check
                _
              $region68: #{appnp_forward.2} parent=43 // pred_check_branch
                %349 = sbr.rel target = $region70
              $region69: #{appnp_forward.2} parent=43 // pred_region
                _
              $region70: #{appnp_forward.2} parent=43 // pred_fallthru
                _
            $region44: #{appnp_forward.2} parent=39 // pred_fallthru
              _
            // Predicated region
            $region45: #{appnp_forward.2} parent=39 // pred_check
              _
            $region46: #{appnp_forward.2} parent=39 // pred_check_branch
              %312 = sbr.rel target = $region48
            $region47: #{appnp_forward.2} parent=39 // pred_region
              loop: start=0, step=1, limit=1
              $region49: #{appnp_forward.2} parent=47 // loop_pre_header
                _
              $region50: #{appnp_forward.2} parent=47 // loop_header
                %s315 = sphi 0, %s319
                %p316 = scmp.ge.s32.totalorder %s315, 1
                %s320 = sphi %s295, %s295
                %s321 = sphi %s306, %s306
              $region51: #{appnp_forward.2} parent=47 // loop_header_branch
                %318 = sbr.rel (%p316) target = $region55
              $region52: #{appnp_forward.2} parent=47 // loop_body
                %v322 = vld [vmem:[%s320] sm:$0xff]
                %323 = vst [vmem:[%s321] sm:$0xff] %v322
                %v324 = vld [vmem:[%s320 + $0x8] sm:$0xff]
                %325 = vst [vmem:[%s321 + $0x10] sm:$0xff] %v324
                %v326 = vld [vmem:[%s320 + $0x10] sm:$0xff]
                %327 = vst [vmem:[%s321 + $0x20] sm:$0xff] %v326
                %v328 = vld [vmem:[%s320 + $0x18] sm:$0xff]
                %329 = vst [vmem:[%s321 + $0x30] sm:$0xff] %v328
              $region53: #{appnp_forward.2} parent=47 // loop_footer
                %s319 = sadd.s32 1, %s315
              $region54: #{appnp_forward.2} parent=47 // loop_footer_branch
                %314 = sbr.rel target = $region50
              $region55: #{appnp_forward.2} parent=47 // loop_exit
                _
            $region48: #{appnp_forward.2} parent=39 // pred_fallthru
              _
          $region40: #{appnp_forward.2} parent=35 // pred_fallthru
            _
          %350 = vnop
        $region36: #{appnp_forward.2} parent=23 // pred_fallthru
          _
        // Predicated region
        $region71: #{appnp_forward.2} parent=23 // pred_check
          %p351 = pneg %p103
        $region72: #{appnp_forward.2} parent=23 // pred_check_branch
          %353 = sbr.rel (%p351) target = $region74
        $region73: #{appnp_forward.2} parent=23 // pred_region
          _
        $region74: #{appnp_forward.2} parent=23 // pred_fallthru
          _
      $region24: #{appnp_forward.2} parent=5 // pred_fallthru
        _
      %p354 = scmp.le.s32.totalorder 2, %s12
      // Predicated region
      $region75: #{appnp_forward.2} parent=5 // pred_check
        %p355 = pneg %p354
      $region76: #{appnp_forward.2} parent=5 // pred_check_branch
        %357 = sbr.rel (%p355) target = $region78
      $region77: #{appnp_forward.2} parent=5 // pred_region
        %s358 = ssub.s32 %s12, 2
        // Predicated region
        $region79: #{appnp_forward.2} parent=77 // pred_check
          %p359 = pneg %p83
        $region80: #{appnp_forward.2} parent=77 // pred_check_branch
          %361 = sbr.rel (%p359) target = $region82
        $region81: #{appnp_forward.2} parent=77 // pred_region
          %s362 = sand.u32 %s68, 1
          %s363 = sand.u32 %s68, 1
          %s364 = smul.addr %s363, 32
          %s365 = scalar_lea.vmem [#allocation4], %s364
        $region82: #{appnp_forward.2} parent=77 // pred_fallthru
          _
        // Predicated region
        $region83: #{appnp_forward.2} parent=77 // pred_check
          %p366 = pneg %p109
        $region84: #{appnp_forward.2} parent=77 // pred_check_branch
          %368 = sbr.rel (%p366) target = $region86
        $region85: #{appnp_forward.2} parent=77 // pred_region
          %p369 = scmp.lt.s32.totalorder %s23, 1
          %s370 = scalar_select %p369, %s23, 1
          %s371 = scalar_lea.vmem %s2, %s370
        $region86: #{appnp_forward.2} parent=77 // pred_fallthru
          _
      $region78: #{appnp_forward.2} parent=5 // pred_fallthru
        _
    $region6: #{appnp_forward.2} parent=1 // loop_footer
      %s16 = sadd.s32 1, %s12
    $region7: #{appnp_forward.2} parent=1 // loop_footer_branch
      %11 = sbr.rel target = $region3
    $region8: #{appnp_forward.2} parent=1 // loop_exit
      _
    %372 = vsyncpa [#allocation3], 1
    %s373 = scalar_lea.sflag [#allocation3], 1
    %374 = vsyncpa %s373, 1

// kernel: appnp_forward.3
$region0: #{appnp_forward.3}
  #allocation0 [shape = 'u32[]', space=smem, size = 0x4, offset = 0x4, fixed_abs, tag = 'smem constant byte address 0x4 - core index']
  #allocation1 [shape = 'u32[144,128]{1,0:T(1,128)}', space=vmem, size = 0x12000, scoped, tag = 'internal scratch']
  #allocation2 [shape = 'f32[128,8]{1,0:T(8,128)}', space=vmem, size = 0x10000, scoped, tag = 'scratch operand']
  #allocation3 [shape = 'f32[128,1]{1,0:T(8,128)}', space=vmem, size = 0x10000, scoped, tag = 'scratch operand']
  %s0 = inlined_call_operand.vmem [shape: s8[256,256], index: 0, kind: input, shape index: {}]
  %s1 = inlined_call_operand.vmem [shape: f32[256,32], index: 1, kind: input, shape index: {}, may-alias: {1,2}]
  %s2 = inlined_call_operand.vmem [shape: f32[256,32], index: 2, kind: input, shape index: {}, may-alias: {1,2}]
  %s3 = inlined_call_operand.vmem [shape: f32[32,8], index: 3, kind: input, shape index: {}]
  %s4 = inlined_call_operand.vmem [shape: f32[1,8], index: 4, kind: input, shape index: {}]
  %s5 = inlined_call_operand.vmem [shape: f32[256,1], index: 5, kind: input, shape index: {}]
  %s6 = inlined_call_operand.vmem [shape: f32[256,8], index: 6, kind: output, shape index: {}]
  %s7 = sld [smem:[#allocation0]]
  $region103: #{appnp_forward.3} parent=0
    _
  %s9 = ssub.s32 1, %s7
  %s10 = scalar_select 0, %s9, %s7
  $region1: #{appnp_forward.3} parent=0
    #allocation4 [shape = 'u8[32768]{0}', space=vmem, size = 0x8000, scoped, tag = 'input window, operand 0']
    loop: start=0, step=1, limit=6
    $region2: #{appnp_forward.3} parent=1 // loop_pre_header
      _
    $region3: #{appnp_forward.3} parent=1 // loop_header
      %s12 = sphi 0, %s16
      %p13 = scmp.ge.s32.totalorder %s12, 6
      %s19 = sphi 0, %s31
      %s20 = sphi 0, %s27
      %s21 = sphi 0, %s19
      %s22 = sphi 0, %s20
      %s23 = sphi 0, %s21
      %s24 = sphi 0, %s22
      %s36 = sphi 0, %s38
      %s39 = sphi 0, %s36
      %s40 = sphi 0, %s39
      %s56 = sphi 0, %s40
      %s62 = sphi 0, %s64
      %s65 = sphi 0, %s62
      %s66 = sphi 0, %s65
      %s82 = sphi 0, %s66
      %s88 = sphi 0, %s90
      %s91 = sphi 0, %s88
      %s92 = sphi 0, %s91
      %s108 = sphi 0, %s92
      %s112 = sphi 0, %s112
      %s114 = sphi 0, %s112
      %s115 = sphi 0, %s114
      %s129 = sphi 0, %s115
      %s133 = sphi 0, %s133
      %s135 = sphi 0, %s133
      %s136 = sphi 0, %s135
      %s150 = sphi 0, %s136
      %s156 = sphi 0, %s158
      %s159 = sphi 0, %s156
      %s160 = sphi 0, %s159
      %s176 = sphi 0, %s160
      %s182 = sphi 0, %s184
      %s185 = sphi 0, %s182
      %s186 = sphi 0, %s185
      %s202 = sphi 0, %s186
    $region4: #{appnp_forward.3} parent=1 // loop_header_branch
      %15 = sbr.rel (%p13) target = $region8
    $region5: #{appnp_forward.3} parent=1 // loop_body
      %s17 = ssub.s32 %s12, 1
      %s18 = ssub.s32 %s12, 2
      %s25 = sadd.s32 1, %s20
      %p26 = scmp.ge.s32.totalorder %s25, 2
      %s27 = scalar_select %p26, 0, %s25
      %s28 = sadd.s32 1, %s19
      %s29 = scalar_select %p26, %s28, %s19
      %p30 = scmp.ge.s32.totalorder %s29, 2
      %s31 = scalar_select %p30, 0, %s29
      %s32 = ssub.s32 %s19, %s31
      %s33 = ssub.s32 %s20, %s27
      %s34 = sor.u32 %s32, %s33
      %p35 = scmp.eq.s32.totalorder %s34, 0
      %s37 = sadd.s32 %s36, 1
      %s38 = scalar_select %p35, %s36, %s37
      %p41 = pneg %p35
      %p42 = scmp.eq.s32.totalorder %s12, 3
      %p43 = por %p41, %p42
      %p44 = scmp.ne.s32.totalorder %s36, %s39
      %p45 = scmp.eq.s32.totalorder %s12, 0
      %p46 = por %p44, %p45
      %p47 = scmp.ne.s32.totalorder %s36, %s39
      %p48 = scmp.eq.s32.totalorder %s17, 3
      %p49 = por %p47, %p48
      %p50 = scmp.ne.s32.totalorder %s39, %s40
      %p51 = scmp.eq.s32.totalorder %s17, 0
      %p52 = por %p50, %p51
      %p53 = scmp.ne.s32.totalorder %s39, %s40
      %p54 = scmp.eq.s32.totalorder %s18, 3
      %p55 = por %p53, %p54
      %p57 = scmp.ne.s32.totalorder %s40, %s56
      %p58 = scmp.eq.s32.totalorder %s18, 0
      %p59 = por %p57, %p58
      %s60 = ssub.s32 %s20, %s27
      %p61 = scmp.eq.s32.totalorder %s60, 0
      %s63 = sadd.s32 %s62, 1
      %s64 = scalar_select %p61, %s62, %s63
      %p67 = pneg %p61
      %p68 = scmp.eq.s32.totalorder %s12, 3
      %p69 = por %p67, %p68
      %p70 = scmp.ne.s32.totalorder %s62, %s65
      %p71 = scmp.eq.s32.totalorder %s12, 0
      %p72 = por %p70, %p71
      %p73 = scmp.ne.s32.totalorder %s62, %s65
      %p74 = scmp.eq.s32.totalorder %s17, 3
      %p75 = por %p73, %p74
      %p76 = scmp.ne.s32.totalorder %s65, %s66
      %p77 = scmp.eq.s32.totalorder %s17, 0
      %p78 = por %p76, %p77
      %p79 = scmp.ne.s32.totalorder %s65, %s66
      %p80 = scmp.eq.s32.totalorder %s18, 3
      %p81 = por %p79, %p80
      %p83 = scmp.ne.s32.totalorder %s66, %s82
      %p84 = scmp.eq.s32.totalorder %s18, 0
      %p85 = por %p83, %p84
      %s86 = ssub.s32 %s19, %s31
      %p87 = scmp.eq.s32.totalorder %s86, 0
      %s89 = sadd.s32 %s88, 1
      %s90 = scalar_select %p87, %s88, %s89
      %p93 = pneg %p87
      %p94 = scmp.eq.s32.totalorder %s12, 3
      %p95 = por %p93, %p94
      %p96 = scmp.ne.s32.totalorder %s88, %s91
      %p97 = scmp.eq.s32.totalorder %s12, 0
      %p98 = por %p96, %p97
      %p99 = scmp.ne.s32.totalorder %s88, %s91
      %p100 = scmp.eq.s32.totalorder %s17, 3
      %p101 = por %p99, %p100
      %p102 = scmp.ne.s32.totalorder %s91, %s92
      %p103 = scmp.eq.s32.totalorder %s17, 0
      %p104 = por %p102, %p103
      %p105 = scmp.ne.s32.totalorder %s91, %s92
      %p106 = scmp.eq.s32.totalorder %s18, 3
      %p107 = por %p105, %p106
      %p109 = scmp.ne.s32.totalorder %s92, %s108
      %p110 = scmp.eq.s32.totalorder %s18, 0
      %p111 = por %p109, %p110
      %s113 = sadd.s32 %s112, 1
      %p116 = scmp.eq.s32.totalorder %s12, 3
      %p117 = scmp.ne.s32.totalorder %s112, %s114
      %p118 = scmp.eq.s32.totalorder %s12, 0
      %p119 = por %p117, %p118
      %p120 = scmp.ne.s32.totalorder %s112, %s114
      %p121 = scmp.eq.s32.totalorder %s17, 3
      %p122 = por %p120, %p121
      %p123 = scmp.ne.s32.totalorder %s114, %s115
      %p124 = scmp.eq.s32.totalorder %s17, 0
      %p125 = por %p123, %p124
      %p126 = scmp.ne.s32.totalorder %s114, %s115
      %p127 = scmp.eq.s32.totalorder %s18, 3
      %p128 = por %p126, %p127
      %p130 = scmp.ne.s32.totalorder %s115, %s129
      %p131 = scmp.eq.s32.totalorder %s18, 0
      %p132 = por %p130, %p131
      %s134 = sadd.s32 %s133, 1
      %p137 = scmp.eq.s32.totalorder %s12, 3
      %p138 = scmp.ne.s32.totalorder %s133, %s135
      %p139 = scmp.eq.s32.totalorder %s12, 0
      %p140 = por %p138, %p139
      %p141 = scmp.ne.s32.totalorder %s133, %s135
      %p142 = scmp.eq.s32.totalorder %s17, 3
      %p143 = por %p141, %p142
      %p144 = scmp.ne.s32.totalorder %s135, %s136
      %p145 = scmp.eq.s32.totalorder %s17, 0
      %p146 = por %p144, %p145
      %p147 = scmp.ne.s32.totalorder %s135, %s136
      %p148 = scmp.eq.s32.totalorder %s18, 3
      %p149 = por %p147, %p148
      %p151 = scmp.ne.s32.totalorder %s136, %s150
      %p152 = scmp.eq.s32.totalorder %s18, 0
      %p153 = por %p151, %p152
      %s154 = ssub.s32 %s20, %s27
      %p155 = scmp.eq.s32.totalorder %s154, 0
      %s157 = sadd.s32 %s156, 1
      %s158 = scalar_select %p155, %s156, %s157
      %p161 = pneg %p155
      %p162 = scmp.eq.s32.totalorder %s12, 3
      %p163 = por %p161, %p162
      %p164 = scmp.ne.s32.totalorder %s156, %s159
      %p165 = scmp.eq.s32.totalorder %s12, 0
      %p166 = por %p164, %p165
      %p167 = scmp.ne.s32.totalorder %s156, %s159
      %p168 = scmp.eq.s32.totalorder %s17, 3
      %p169 = por %p167, %p168
      %p170 = scmp.ne.s32.totalorder %s159, %s160
      %p171 = scmp.eq.s32.totalorder %s17, 0
      %p172 = por %p170, %p171
      %p173 = scmp.ne.s32.totalorder %s159, %s160
      %p174 = scmp.eq.s32.totalorder %s18, 3
      %p175 = por %p173, %p174
      %p177 = scmp.ne.s32.totalorder %s160, %s176
      %p178 = scmp.eq.s32.totalorder %s18, 0
      %p179 = por %p177, %p178
      %s180 = ssub.s32 %s19, %s31
      %p181 = scmp.eq.s32.totalorder %s180, 0
      %s183 = sadd.s32 %s182, 1
      %s184 = scalar_select %p181, %s182, %s183
      %p187 = pneg %p181
      %p188 = scmp.eq.s32.totalorder %s12, 3
      %p189 = por %p187, %p188
      %p190 = scmp.ne.s32.totalorder %s182, %s185
      %p191 = scmp.eq.s32.totalorder %s12, 0
      %p192 = por %p190, %p191
      %p193 = scmp.ne.s32.totalorder %s182, %s185
      %p194 = scmp.eq.s32.totalorder %s17, 3
      %p195 = por %p193, %p194
      %p196 = scmp.ne.s32.totalorder %s185, %s186
      %p197 = scmp.eq.s32.totalorder %s17, 0
      %p198 = por %p196, %p197
      %p199 = scmp.ne.s32.totalorder %s185, %s186
      %p200 = scmp.eq.s32.totalorder %s18, 3
      %p201 = por %p199, %p200
      %p203 = scmp.ne.s32.totalorder %s186, %s202
      %p204 = scmp.eq.s32.totalorder %s18, 0
      %p205 = por %p203, %p204
      %p206 = scmp.le.s32.totalorder 1, %s12
      %p207 = scmp.lt.s32.totalorder %s12, 5
      %p208 = pnand %p206, %p207
      %p209 = pneg %p208
      // Predicated region
      $region9: #{appnp_forward.3} parent=5 // pred_check
        _
      $region10: #{appnp_forward.3} parent=5 // pred_check_branch
        %211 = sbr.rel (%p208) target = $region12
      $region11: #{appnp_forward.3} parent=5 // pred_region
        %s212 = ssub.s32 %s12, 1
        // Predicated region
        $region13: #{appnp_forward.3} parent=11 // pred_check
          %p213 = pneg %p125
        $region14: #{appnp_forward.3} parent=11 // pred_check_branch
          %215 = sbr.rel (%p213) target = $region16
        $region15: #{appnp_forward.3} parent=11 // pred_region
          _
        $region16: #{appnp_forward.3} parent=11 // pred_fallthru
          _
        // Predicated region
        $region17: #{appnp_forward.3} parent=11 // pred_check
          %p216 = pneg %p146
        $region18: #{appnp_forward.3} parent=11 // pred_check_branch
          %218 = sbr.rel (%p216) target = $region20
        $region19: #{appnp_forward.3} parent=11 // pred_region
          _
        $region20: #{appnp_forward.3} parent=11 // pred_fallthru
          _
      $region12: #{appnp_forward.3} parent=5 // pred_fallthru
        _
      %p219 = scmp.lt.s32.totalorder %s12, 4
      // Predicated region
      $region21: #{appnp_forward.3} parent=5 // pred_check
        %p220 = pneg %p219
      $region22: #{appnp_forward.3} parent=5 // pred_check_branch
        %222 = sbr.rel (%p220) target = $region24
      $region23: #{appnp_forward.3} parent=5 // pred_region
        // Predicated region
        $region25: #{appnp_forward.3} parent=23 // pred_check
          %p223 = pneg %p46
        $region26: #{appnp_forward.3} parent=23 // pred_check_branch
          %225 = sbr.rel (%p223) target = $region28
        $region27: #{appnp_forward.3} parent=23 // pred_region
          %s226 = sand.u32 %s36, 1
          %s227 = sand.u32 %s36, 1
          %s228 = smul.addr %s227, 32
          %s229 = scalar_lea.vmem [#allocation4], %s228
          %s230 = smul.u32 4, %s19
          %s231 = smul.addr %s230, 2
          %s232 = sadd.s32 %s20, %s231
          %s233 = smul.addr %s232, 8
          %s234 = scalar_lea.vmem %s0, %s233
          // Predicated region
          $region29: #{appnp_forward.3} parent=27 // pred_check
            _
          $region30: #{appnp_forward.3} parent=27 // pred_check_branch
            %236 = sbr.rel (0) target = $region32
          $region31: #{appnp_forward.3} parent=27 // pred_region
            // Predicated region
            $region33: #{appnp_forward.3} parent=31 // pred_check
              _
            $region34: #{appnp_forward.3} parent=31 // pred_check_branch
              %238 = sbr.rel (0) target = $region36
            $region35: #{appnp_forward.3} parent=31 // pred_region
              // Predicated region
              $region48: #{appnp_forward.3} parent=35 // pred_check
                _
              $region49: #{appnp_forward.3} parent=35 // pred_check_branch
                %259 = sbr.rel (0) target = $region51
              $region50: #{appnp_forward.3} parent=35 // pred_region
                loop: start=0, step=1, limit=1
                $region52: #{appnp_forward.3} parent=50 // loop_pre_header
                  _
                $region53: #{appnp_forward.3} parent=50 // loop_header
                  %s261 = sphi 0, %s265
                  %p262 = scmp.ge.s32.totalorder %s261, 1
                  %s266 = sphi %s234, %s234
                  %s267 = sphi %s229, %s229
                $region54: #{appnp_forward.3} parent=50 // loop_header_branch
                  %264 = sbr.rel (%p262) target = $region58
                $region55: #{appnp_forward.3} parent=50 // loop_body
                  %v268 = vld [vmem:[%s266] sm:$0xff]
                  %269 = vst [vmem:[%s267] sm:$0xff] %v268
                  %v270 = vld [vmem:[%s266 + $0x10] sm:$0xff]
                  %271 = vst [vmem:[%s267 + $0x8] sm:$0xff] %v270
                  %v272 = vld [vmem:[%s266 + $0x20] sm:$0xff]
                  %273 = vst [vmem:[%s267 + $0x10] sm:$0xff] %v272
                  %v274 = vld [vmem:[%s266 + $0x30] sm:$0xff]
                  %275 = vst [vmem:[%s267 + $0x18] sm:$0xff] %v274
                $region56: #{appnp_forward.3} parent=50 // loop_footer
                  %s265 = sadd.s32 1, %s261
                $region57: #{appnp_forward.3} parent=50 // loop_footer_branch
                  %260 = sbr.rel target = $region53
                $region58: #{appnp_forward.3} parent=50 // loop_exit
                  _
              $region51: #{appnp_forward.3} parent=35 // pred_fallthru
                _
              // Predicated region
              $region59: #{appnp_forward.3} parent=35 // pred_check
                _
              $region60: #{appnp_forward.3} parent=35 // pred_check_branch
                %277 = sbr.rel target = $region62
              $region61: #{appnp_forward.3} parent=35 // pred_region
                _
              $region62: #{appnp_forward.3} parent=35 // pred_fallthru
                _
            $region36: #{appnp_forward.3} parent=31 // pred_fallthru
              _
            // Predicated region
            $region37: #{appnp_forward.3} parent=31 // pred_check
              _
            $region38: #{appnp_forward.3} parent=31 // pred_check_branch
              %240 = sbr.rel target = $region40
            $region39: #{appnp_forward.3} parent=31 // pred_region
              loop: start=0, step=1, limit=1
              $region41: #{appnp_forward.3} parent=39 // loop_pre_header
                _
              $region42: #{appnp_forward.3} parent=39 // loop_header
                %s243 = sphi 0, %s247
                %p244 = scmp.ge.s32.totalorder %s243, 1
                %s248 = sphi %s234, %s234
                %s249 = sphi %s229, %s229
              $region43: #{appnp_forward.3} parent=39 // loop_header_branch
                %246 = sbr.rel (%p244) target = $region47
              $region44: #{appnp_forward.3} parent=39 // loop_body
                %v250 = vld [vmem:[%s248] sm:$0xff]
                %251 = vst [vmem:[%s249] sm:$0xff] %v250
                %v252 = vld [vmem:[%s248 + $0x10] sm:$0xff]
                %253 = vst [vmem:[%s249 + $0x8] sm:$0xff] %v252
                %v254 = vld [vmem:[%s248 + $0x20] sm:$0xff]
                %255 = vst [vmem:[%s249 + $0x10] sm:$0xff] %v254
                %v256 = vld [vmem:[%s248 + $0x30] sm:$0xff]
                %257 = vst [vmem:[%s249 + $0x18] sm:$0xff] %v256
              $region45: #{appnp_forward.3} parent=39 // loop_footer
                %s247 = sadd.s32 1, %s243
              $region46: #{appnp_forward.3} parent=39 // loop_footer_branch
                %242 = sbr.rel target = $region42
              $region47: #{appnp_forward.3} parent=39 // loop_exit
                _
            $region40: #{appnp_forward.3} parent=31 // pred_fallthru
              _
          $region32: #{appnp_forward.3} parent=27 // pred_fallthru
            _
          %278 = vnop
        $region28: #{appnp_forward.3} parent=23 // pred_fallthru
          _
        // Predicated region
        $region63: #{appnp_forward.3} parent=23 // pred_check
          %p279 = pneg %p72
        $region64: #{appnp_forward.3} parent=23 // pred_check_branch
          %281 = sbr.rel (%p279) target = $region66
        $region65: #{appnp_forward.3} parent=23 // pred_region
          %s282 = smul.u32 16, %s20
          %p283 = scmp.lt.s32.totalorder %s282, 31
          %s284 = scalar_select %p283, %s282, 31
          %s285 = smul.addr %s284, 8
          %s286 = scalar_lea.vmem %s1, %s285
          %s287 = smul.u32 16, %s20
        $region66: #{appnp_forward.3} parent=23 // pred_fallthru
          _
        // Predicated region
        $region67: #{appnp_forward.3} parent=23 // pred_check
          %p288 = pneg %p98
        $region68: #{appnp_forward.3} parent=23 // pred_check_branch
          %290 = sbr.rel (%p288) target = $region70
        $region69: #{appnp_forward.3} parent=23 // pred_region
          %s291 = smul.u32 16, %s19
          %p292 = scmp.lt.s32.totalorder %s291, 31
          %s293 = scalar_select %p292, %s291, 31
          %s294 = smul.addr %s293, 8
          %s295 = scalar_lea.vmem %s2, %s294
          %s296 = smul.u32 16, %s19
        $region70: #{appnp_forward.3} parent=23 // pred_fallthru
          _
        // Predicated region
        $region71: #{appnp_forward.3} parent=23 // pred_check
          %p297 = pneg %p166
        $region72: #{appnp_forward.3} parent=23 // pred_check_branch
          %299 = sbr.rel (%p297) target = $region74
        $region73: #{appnp_forward.3} parent=23 // pred_region
          %s300 = smul.u32 16, %s20
          %p301 = scmp.lt.s32.totalorder %s300, 31
          %s302 = scalar_select %p301, %s300, 31
          %s303 = smul.addr %s302, 8
          %s304 = scalar_lea.vmem %s5, %s303
          %s305 = smul.u32 16, %s20
        $region74: #{appnp_forward.3} parent=23 // pred_fallthru
          _
      $region24: #{appnp_forward.3} parent=5 // pred_fallthru
        _
      %p306 = scmp.le.s32.totalorder 1, %s12
      %p307 = scmp.lt.s32.totalorder %s12, 5
      %p308 = pnand %p306, %p307
      %p309 = pneg %p308
      // Predicated region
      $region75: #{appnp_forward.3} parent=5 // pred_check
        _
      $region76: #{appnp_forward.3} parent=5 // pred_check_branch
        %311 = sbr.rel (%p308) target = $region78
      $region77: #{appnp_forward.3} parent=5 // pred_region
        %s312 = ssub.s32 %s12, 1
        %s313 = sand.u32 %s39, 1
        %s314 = sand.u32 %s39, 1
        %s315 = smul.addr %s314, 32
        %s316 = scalar_lea.vmem [#allocation4], %s315
        // Predicated region
        $region79: #{appnp_forward.3} parent=77 // pred_check
          %p317 = pneg %p52
        $region80: #{appnp_forward.3} parent=77 // pred_check_branch
          %319 = sbr.rel (%p317) target = $region82
        $region81: #{appnp_forward.3} parent=77 // pred_region
          _
        $region82: #{appnp_forward.3} parent=77 // pred_fallthru
          _
        %s320 = sand.u32 %s39, 1
        %s321 = sand.u32 %s39, 1
        %s322 = smul.addr %s321, 32
        %s323 = scalar_lea.vmem [#allocation4], %s322
        %p324 = pneg %p52
        %p325 = pneg %p49
        %s326 = smul.u32 16, %s22
        %p327 = scmp.lt.s32.totalorder %s326, 31
        %s328 = scalar_select %p327, %s326, 31
        %s329 = smul.addr %s328, 8
        %s330 = scalar_lea.vmem %s1, %s329
        %p331 = pneg %p78
        %p332 = pneg %p75
        %s333 = smul.u32 16, %s21
        %p334 = scmp.lt.s32.totalorder %s333, 31
        %s335 = scalar_select %p334, %s333, 31
        %s336 = smul.addr %s335, 8
        %s337 = scalar_lea.vmem %s2, %s336
        %p338 = pneg %p104
        %p339 = pneg %p101
        %p340 = pneg %p125
        %p341 = pneg %p122
        %p342 = pneg %p146
        %p343 = pneg %p143
        %s344 = smul.u32 16, %s22
        %p345 = scmp.lt.s32.totalorder %s344, 31
        %s346 = scalar_select %p345, %s344, 31
        %s347 = smul.addr %s346, 8
        %s348 = scalar_lea.vmem %s5, %s347
        %p349 = pneg %p172
        %p350 = pneg %p169
        %p351 = pneg %p198
        %p352 = pneg %p195
        %s353 = smul.u32 16, %s21
        %p354 = scmp.lt.s32.totalorder %s353, 31
        %s355 = scalar_select %p354, %s353, 31
        %s356 = smul.addr %s355, 8
        %s357 = scalar_lea.vmem %s6, %s356
        %s358 = smul.u32 4, %s21
        %s359 = smul.u32 16, %s22
        %p360 = scmp.lt.s32.totalorder %s359, 31
        %s361 = scalar_select %p360, %s359, 31
        %s362 = smul.addr %s361, 8
        %s363 = scalar_lea.vmem %s1, %s362
        %s364 = smul.u32 16, %s22
        %s365 = smul.u32 16, %s21
        %p366 = scmp.lt.s32.totalorder %s365, 31
        %s367 = scalar_select %p366, %s365, 31
        %s368 = smul.addr %s367, 8
        %s369 = scalar_lea.vmem %s2, %s368
        %s370 = smul.u32 16, %s21
        %s371 = smul.u32 16, %s22
        %p372 = scmp.lt.s32.totalorder %s371, 31
        %s373 = scalar_select %p372, %s371, 31
        %s374 = smul.addr %s373, 8
        %s375 = scalar_lea.vmem %s5, %s374
        %s376 = smul.u32 16, %s22
        %s377 = smul.u32 16, %s21
        %p378 = scmp.lt.s32.totalorder %s377, 31
        %s379 = scalar_select %p378, %s377, 31
        %s380 = smul.addr %s379, 8
        %s381 = scalar_lea.vmem %s6, %s380
        %s382 = smul.u32 16, %s21
        %p384 = scmp.eq.s32.totalorder %s22, 0
        // Predicated region
        $region83: #{appnp_forward.3} parent=77 // pred_check
          %p385 = pneg %p384
        $region84: #{appnp_forward.3} parent=77 // pred_check_branch
          %387 = sbr.rel (%p385) target = $region86
        $region85: #{appnp_forward.3} parent=77 // pred_region
          %vm388 = vcmask 64512
          %389 = vst.msk [vmem:[#allocation2] sm:$0xff] %vm388, 0.0
          %390 = vst.msk [vmem:[#allocation2 + $0x8] sm:$0xff] %vm388, 0.0
          %391 = vst.msk [vmem:[#allocation2 + $0x10] sm:$0xff] %vm388, 0.0
          %392 = vst.msk [vmem:[#allocation2 + $0x18] sm:$0xff] %vm388, 0.0
          %393 = vst.msk [vmem:[#allocation2 + $0x20] sm:$0xff] %vm388, 0.0
          %394 = vst.msk [vmem:[#allocation2 + $0x28] sm:$0xff] %vm388, 0.0
          %395 = vst.msk [vmem:[#allocation2 + $0x30] sm:$0xff] %vm388, 0.0
          %396 = vst.msk [vmem:[#allocation2 + $0x38] sm:$0xff] %vm388, 0.0
          %397 = vst.msk [vmem:[#allocation2 + $0x40] sm:$0xff] %vm388, 0.0
          %398 = vst.msk [vmem:[#allocation2 + $0x48] sm:$0xff] %vm388, 0.0
          %399 = vst.msk [vmem:[#allocation2 + $0x50] sm:$0xff] %vm388, 0.0
          %400 = vst.msk [vmem:[#allocation2 + $0x58] sm:$0xff] %vm388, 0.0
          %401 = vst.msk [vmem:[#allocation2 + $0x60] sm:$0xff] %vm388, 0.0
          %402 = vst.msk [vmem:[#allocation2 + $0x68] sm:$0xff] %vm388, 0.0
          %403 = vst.msk [vmem:[#allocation2 + $0x70] sm:$0xff] %vm388, 0.0
          %404 = vst.msk [vmem:[#allocation2 + $0x78] sm:$0xff] %vm388, 0.0
          %vm405 = vcmask 7168
          %406 = vst.msk [vmem:[#allocation3] sm:$0xff] %vm405, 0.0
          %407 = vst.msk [vmem:[#allocation3 + $0x8] sm:$0xff] %vm405, 0.0
          %408 = vst.msk [vmem:[#allocation3 + $0x10] sm:$0xff] %vm405, 0.0
          %409 = vst.msk [vmem:[#allocation3 + $0x18] sm:$0xff] %vm405, 0.0
          %410 = vst.msk [vmem:[#allocation3 + $0x20] sm:$0xff] %vm405, 0.0
          %411 = vst.msk [vmem:[#allocation3 + $0x28] sm:$0xff] %vm405, 0.0
          %412 = vst.msk [vmem:[#allocation3 + $0x30] sm:$0xff] %vm405, 0.0
          %413 = vst.msk [vmem:[#allocation3 + $0x38] sm:$0xff] %vm405, 0.0
          %414 = vst.msk [vmem:[#allocation3 + $0x40] sm:$0xff] %vm405, 0.0
          %415 = vst.msk [vmem:[#allocation3 + $0x48] sm:$0xff] %vm405, 0.0
          %416 = vst.msk [vmem:[#allocation3 + $0x50] sm:$0xff] %vm405, 0.0
          %417 = vst.msk [vmem:[#allocation3 + $0x58] sm:$0xff] %vm405, 0.0
          %418 = vst.msk [vmem:[#allocation3 + $0x60] sm:$0xff] %vm405, 0.0
          %419 = vst.msk [vmem:[#allocation3 + $0x68] sm:$0xff] %vm405, 0.0
          %420 = vst.msk [vmem:[#allocation3 + $0x70] sm:$0xff] %vm405, 0.0
          %421 = vst.msk [vmem:[#allocation3 + $0x78] sm:$0xff] %vm405, 0.0
        $region86: #{appnp_forward.3} parent=77 // pred_fallthru
          _
        %v422 = vld [vmem:[%s316] sm:$0xff]
        %v423 = vld [vmem:[%s316 + $0x8] sm:$0xff]
        %v424 = vld [vmem:[%s316 + $0x10] sm:$0xff]
        %v425 = vld [vmem:[%s316 + $0x18] sm:$0xff]
        %v426 = vunpack.c.l.s8.bf16 %v422
        %v427 = vunpack.c.h.s8.bf16 %v422
        %v428 = vunpack.c.l.s8.bf16 %v423
        %v429 = vunpack.c.h.s8.bf16 %v423
        %v430 = vunpack.c.l.s8.bf16 %v424
        %v431 = vunpack.c.h.s8.bf16 %v424
        %v432 = vunpack.c.l.s8.bf16 %v425
        %v433 = vunpack.c.h.s8.bf16 %v425
        %v434 = vld [vmem:[%s363] sm:$0xff]
        %v435 = vld [vmem:[%s363 + $0x8] sm:$0xff]
        %v436 = vld [vmem:[%s363 + $0x10] sm:$0xff]
        %v437 = vld [vmem:[%s363 + $0x18] sm:$0xff]
        %v438 = vld [vmem:[%s363 + $0x20] sm:$0xff]
        %v439 = vld [vmem:[%s363 + $0x28] sm:$0xff]
        %v440 = vld [vmem:[%s363 + $0x30] sm:$0xff]
        %v441 = vld [vmem:[%s363 + $0x38] sm:$0xff]
        %v442 = vld [vmem:[%s363 + $0x40] sm:$0xff]
        %v443 = vld [vmem:[%s363 + $0x48] sm:$0xff]
        %v444 = vld [vmem:[%s363 + $0x50] sm:$0xff]
        %v445 = vld [vmem:[%s363 + $0x58] sm:$0xff]
        %v446 = vld [vmem:[%s363 + $0x60] sm:$0xff]
        %v447 = vld [vmem:[%s363 + $0x68] sm:$0xff]
        %v448 = vld [vmem:[%s363 + $0x70] sm:$0xff]
        %v449 = vld [vmem:[%s363 + $0x78] sm:$0xff]
        %v450 = vld [vmem:[%s3] sm:$0xff]
        %v451 = vld [vmem:[%s3 + $0x8] sm:$0xff]
        %v452 = vld [vmem:[%s3 + $0x10] sm:$0xff]
        %v453 = vld [vmem:[%s3 + $0x18] sm:$0xff]
        %v454 = vld [vmem:[%s4] sm:$0x1]
        %v456 = vlaneseq
        %v457 = vshrl.u32 %v456, 7
        %v458 = vsub.s32 0, %v457
        %v459 = vrot.slane %v454, %v458
        %vm461 = vcmask 261120
        %v463 = vsel %vm461, %v434, 0
        %v466 = vsel %vm461, %v435, 0
        %v469 = vsel %vm461, %v436, 0
        %v472 = vsel %vm461, %v437, 0
        %v475 = vsel %vm461, %v438, 0
        %v478 = vsel %vm461, %v439, 0
        %v481 = vsel %vm461, %v440, 0
        %v484 = vsel %vm461, %v441, 0
        %v487 = vsel %vm461, %v442, 0
        %v490 = vsel %vm461, %v443, 0
        %v493 = vsel %vm461, %v444, 0
        %v496 = vsel %vm461, %v445, 0
        %v499 = vsel %vm461, %v446, 0
        %v502 = vsel %vm461, %v447, 0
        %v505 = vsel %vm461, %v448, 0
        %v508 = vsel %vm461, %v449, 0
        %510 = vmatprep.subr.mxu0 0.0
        %511 = vmatpush1.msra.mxu0 %v450
        %512 = vmatprep.subr.mxu0 0.0
        %513 = vmatpush1.msra.mxu0 %v451
        %514 = vmatprep.subr.mxu0 0.0
        %515 = vmatpush1.msra.mxu0 %v452
        %516 = vmatprep.subr.mxu0 0.0
        %517 = vmatpush1.msra.mxu0 %v453
        %518 = vmatprep.subr.mxu0 0.0
        %519 = vmatpush1.msra.mxu0 0.0
        %520 = vmatprep.subr.mxu0 0.0
        %521 = vmatpush1.msra.mxu0 0.0
        %522 = vmatprep.subr.mxu0 0.0
        %523 = vmatpush1.msra.mxu0 0.0
        %524 = vmatprep.subr.mxu0 0.0
        %525 = vmatpush1.msra.mxu0 0.0
        %526 = vmatprep.subr.mxu0 0.0
        %527 = vmatpush1.msra.mxu0 0.0
        %528 = vmatprep.subr.mxu0 0.0
        %529 = vmatpush1.msra.mxu0 0.0
        %530 = vmatprep.subr.mxu0 0.0
        %531 = vmatpush1.msra.mxu0 0.0
        %532 = vmatprep.subr.mxu0 0.0
        %533 = vmatpush1.msra.mxu0 0.0
        %534 = vmatprep.subr.mxu0 0.0
        %535 = vmatpush1.msra.mxu0 0.0
        %536 = vmatprep.subr.mxu0 0.0
        %537 = vmatpush1.msra.mxu0 0.0
        %538 = vmatprep.subr.mxu0 0.0
        %539 = vmatpush1.msra.mxu0 0.0
        %540 = vmatprep.subr.mxu0 0.0
        %541 = vmatpush1.msra.mxu0 0.0
        %542 = vmatprep.subr.mxu0 0.0
        %543 = vmatpush1.msra.mxu0 0.0
        %544 = vmatprep.subr.mxu0 0.0
        %545 = vmatpush1.msra.mxu0 0.0
        %546 = vmatprep.subr.mxu0 0.0
        %547 = vmatpush1.msra.mxu0 0.0
        %548 = vmatprep.subr.mxu0 0.0
        %549 = vmatpush1.msra.mxu0 0.0
        %550 = vmatprep.subr.mxu0 0.0
        %551 = vmatpush1.msra.mxu0 0.0
        %552 = vmatprep.subr.mxu0 0.0
        %553 = vmatpush1.msra.mxu0 0.0
        %554 = vmatprep.subr.mxu0 0.0
        %555 = vmatpush1.msra.mxu0 0.0
        %556 = vmatprep.subr.mxu0 0.0
        %557 = vmatpush1.msra.mxu0 0.0
        %558 = vmatprep.subr.mxu0 0.0
        %559 = vmatpush1.msra.mxu0 0.0
        %560 = vmatprep.subr.mxu0 0.0
        %561 = vmatpush1.msra.mxu0 0.0
        %562 = vmatprep.subr.mxu0 0.0
        %563 = vmatpush1.msra.mxu0 0.0
        %564 = vmatprep.subr.mxu0 0.0
        %565 = vmatpush1.msra.mxu0 0.0
        %566 = vmatprep.subr.mxu0 0.0
        %567 = vmatpush1.msra.mxu0 0.0
        %568 = vmatprep.subr.mxu0 0.0
        %569 = vmatpush1.msra.mxu0 0.0
        %570 = vmatprep.subr.mxu0 0.0
        %571 = vmatpush1.msra.mxu0 0.0
        %572 = vmatprep.subr.mxu0 0.0
        %573 = vmatpush1.msra.mxu0 0.0
        %574 = vmatprep.mubr.f32.mxu0 0.0
        %575 = vmatmul.mubr.f32.gmra.mrb[0].mxu0 %v463
        %v576 = vpop.f32.mrb[0].mxu0
        %v577 = vadd.f32 %v459, %v576
        %v578 = vpop.f32.mrb[0].mxu0
        %579 = vmatprep.mubr.f32.mxu0 0.0
        %580 = vmatmul.mubr.f32.gmra.mrb[0].mxu0 %v466
        %v581 = vpop.f32.mrb[0].mxu0
        %v582 = vadd.f32 %v459, %v581
        %v583 = vpop.f32.mrb[0].mxu0
        %584 = vmatprep.mubr.f32.mxu0 0.0
        %585 = vmatmul.mubr.f32.gmra.mrb[0].mxu0 %v469
        %v586 = vpop.f32.mrb[0].mxu0
        %v587 = vadd.f32 %v459, %v586
        %v588 = vpop.f32.mrb[0].mxu0
        %589 = vmatprep.mubr.f32.mxu0 0.0
        %590 = vmatmul.mubr.f32.gmra.mrb[0].mxu0 %v472
        %v591 = vpop.f32.mrb[0].mxu0
        %v592 = vadd.f32 %v459, %v591
        %v593 = vpop.f32.mrb[0].mxu0
        %594 = vmatprep.mubr.f32.mxu0 0.0
        %595 = vmatmul.mubr.f32.gmra.mrb[0].mxu0 %v475
        %v596 = vpop.f32.mrb[0].mxu0
        %v597 = vadd.f32 %v459, %v596
        %v598 = vpop.f32.mrb[0].mxu0
        %599 = vmatprep.mubr.f32.mxu0 0.0
        %600 = vmatmul.mubr.f32.gmra.mrb[0].mxu0 %v478
        %v601 = vpop.f32.mrb[0].mxu0
        %v602 = vadd.f32 %v459, %v601
        %v603 = vpop.f32.mrb[0].mxu0
        %604 = vmatprep.mubr.f32.mxu0 0.0
        %605 = vmatmul.mubr.f32.gmra.mrb[0].mxu0 %v481
        %v606 = vpop.f32.mrb[0].mxu0
        %v607 = vadd.f32 %v459, %v606
        %v608 = vpop.f32.mrb[0].mxu0
        %609 = vmatprep.mubr.f32.mxu0 0.0
        %610 = vmatmul.mubr.f32.gmra.mrb[0].mxu0 %v484
        %v611 = vpop.f32.mrb[0].mxu0
        %v612 = vadd.f32 %v459, %v611
        %v613 = vpop.f32.mrb[0].mxu0
        %614 = vmatprep.mubr.f32.mxu0 0.0
        %615 = vmatmul.mubr.f32.gmra.mrb[0].mxu0 %v487
        %v616 = vpop.f32.mrb[0].mxu0
        %v617 = vadd.f32 %v459, %v616
        %v618 = vpop.f32.mrb[0].mxu0
        %619 = vmatprep.mubr.f32.mxu0 0.0
        %620 = vmatmul.mubr.f32.gmra.mrb[0].mxu0 %v490
        %v621 = vpop.f32.mrb[0].mxu0
        %v622 = vadd.f32 %v459, %v621
        %v623 = vpop.f32.mrb[0].mxu0
        %624 = vmatprep.mubr.f32.mxu0 0.0
        %625 = vmatmul.mubr.f32.gmra.mrb[0].mxu0 %v493
        %v626 = vpop.f32.mrb[0].mxu0
        %v627 = vadd.f32 %v459, %v626
        %v628 = vpop.f32.mrb[0].mxu0
        %629 = vmatprep.mubr.f32.mxu0 0.0
        %630 = vmatmul.mubr.f32.gmra.mrb[0].mxu0 %v496
        %v631 = vpop.f32.mrb[0].mxu0
        %v632 = vadd.f32 %v459, %v631
        %v633 = vpop.f32.mrb[0].mxu0
        %634 = vmatprep.mubr.f32.mxu0 0.0
        %635 = vmatmul.mubr.f32.gmra.mrb[0].mxu0 %v499
        %v636 = vpop.f32.mrb[0].mxu0
        %v637 = vadd.f32 %v459, %v636
        %v638 = vpop.f32.mrb[0].mxu0
        %639 = vmatprep.mubr.f32.mxu0 0.0
        %640 = vmatmul.mubr.f32.gmra.mrb[0].mxu0 %v502
        %v641 = vpop.f32.mrb[0].mxu0
        %v642 = vadd.f32 %v459, %v641
        %v643 = vpop.f32.mrb[0].mxu0
        %644 = vmatprep.mubr.f32.mxu0 0.0
        %645 = vmatmul.mubr.f32.gmra.mrb[0].mxu0 %v505
        %v646 = vpop.f32.mrb[0].mxu0
        %v647 = vadd.f32 %v459, %v646
        %v648 = vpop.f32.mrb[0].mxu0
        %649 = vmatprep.mubr.f32.mxu0 0.0
        %650 = vmatmul.mubr.f32.gmra.mrb[0].mxu0 %v508
        %v651 = vpop.f32.mrb[0].mxu0
        %v652 = vadd.f32 %v459, %v651
        %v653 = vpop.f32.mrb[0].mxu0
        %654 = vdwg.mxu0
        %v655 = vmax.f32 %v577, 0.0
        %v656 = vmax.f32 %v582, 0.0
        %v657 = vmax.f32 %v587, 0.0
        %v658 = vmax.f32 %v592, 0.0
        %v659 = vmax.f32 %v597, 0.0
        %v660 = vmax.f32 %v602, 0.0
        %v661 = vmax.f32 %v607, 0.0
        %v662 = vmax.f32 %v612, 0.0
        %v663 = vmax.f32 %v617, 0.0
        %v664 = vmax.f32 %v622, 0.0
        %v665 = vmax.f32 %v627, 0.0
        %v666 = vmax.f32 %v632, 0.0
        %v667 = vmax.f32 %v637, 0.0
        %v668 = vmax.f32 %v642, 0.0
        %v669 = vmax.f32 %v647, 0.0
        %v670 = vmax.f32 %v652, 0.0
        %v671 = vld [vmem:[%s375] sm:$0xff]
        %v672 = vld [vmem:[%s375 + $0x8] sm:$0xff]
        %v673 = vld [vmem:[%s375 + $0x10] sm:$0xff]
        %v674 = vld [vmem:[%s375 + $0x18] sm:$0xff]
        %v675 = vld [vmem:[%s375 + $0x20] sm:$0xff]
        %v676 = vld [vmem:[%s375 + $0x28] sm:$0xff]
        %v677 = vld [vmem:[%s375 + $0x30] sm:$0xff]
        %v678 = vld [vmem:[%s375 + $0x38] sm:$0xff]
        %v679 = vld [vmem:[%s375 + $0x40] sm:$0xff]
        %v680 = vld [vmem:[%s375 + $0x48] sm:$0xff]
        %v681 = vld [vmem:[%s375 + $0x50] sm:$0xff]
        %v682 = vld [vmem:[%s375 + $0x58] sm:$0xff]
        %v683 = vld [vmem:[%s375 + $0x60] sm:$0xff]
        %v684 = vld [vmem:[%s375 + $0x68] sm:$0xff]
        %v685 = vld [vmem:[%s375 + $0x70] sm:$0xff]
        %v686 = vld [vmem:[%s375 + $0x78] sm:$0xff]
        %688 = vset.pattern.permute.xlu0 0
        %689 = vperm.xlu0 %688, %v671
        %v690 = vpop.permute.xlu0 %689
        %693 = vset.pattern.permute.xlu0 0
        %694 = vperm.xlu0 %693, %v672
        %v695 = vpop.permute.xlu0 %694
        %698 = vset.pattern.permute.xlu0 0
        %699 = vperm.xlu0 %698, %v673
        %v700 = vpop.permute.xlu0 %699
        %703 = vset.pattern.permute.xlu0 0
        %704 = vperm.xlu0 %703, %v674
        %v705 = vpop.permute.xlu0 %704
        %708 = vset.pattern.permute.xlu0 0
        %709 = vperm.xlu0 %708, %v675
        %v710 = vpop.permute.xlu0 %709
        %713 = vset.pattern.permute.xlu0 0
        %714 = vperm.xlu0 %713, %v676
        %v715 = vpop.permute.xlu0 %714
        %718 = vset.pattern.permute.xlu0 0
        %719 = vperm.xlu0 %718, %v677
        %v720 = vpop.permute.xlu0 %719
        %723 = vset.pattern.permute.xlu0 0
        %724 = vperm.xlu0 %723, %v678
        %v725 = vpop.permute.xlu0 %724
        %728 = vset.pattern.permute.xlu0 0
        %729 = vperm.xlu0 %728, %v679
        %v730 = vpop.permute.xlu0 %729
        %733 = vset.pattern.permute.xlu0 0
        %734 = vperm.xlu0 %733, %v680
        %v735 = vpop.permute.xlu0 %734
        %738 = vset.pattern.permute.xlu0 0
        %739 = vperm.xlu0 %738, %v681
        %v740 = vpop.permute.xlu0 %739
        %743 = vset.pattern.permute.xlu0 0
        %744 = vperm.xlu0 %743, %v682
        %v745 = vpop.permute.xlu0 %744
        %748 = vset.pattern.permute.xlu0 0
        %749 = vperm.xlu0 %748, %v683
        %v750 = vpop.permute.xlu0 %749
        %753 = vset.pattern.permute.xlu0 0
        %754 = vperm.xlu0 %753, %v684
        %v755 = vpop.permute.xlu0 %754
        %758 = vset.pattern.permute.xlu0 0
        %759 = vperm.xlu0 %758, %v685
        %v760 = vpop.permute.xlu0 %759
        %763 = vset.pattern.permute.xlu0 0
        %764 = vperm.xlu0 %763, %v686
        %v765 = vpop.permute.xlu0 %764
        %v767 = vmul.f32 %v655, %v690
        %v768 = vmul.f32 %v656, %v695
        %v769 = vmul.f32 %v657, %v700
        %v770 = vmul.f32 %v658, %v705
        %v771 = vmul.f32 %v659, %v710
        %v772 = vmul.f32 %v660, %v715
        %v773 = vmul.f32 %v661, %v720
        %v774 = vmul.f32 %v662, %v725
        %v775 = vmul.f32 %v663, %v730
        %v776 = vmul.f32 %v664, %v735
        %v777 = vmul.f32 %v665, %v740
        %v778 = vmul.f32 %v666, %v745
        %v779 = vmul.f32 %v667, %v750
        %v780 = vmul.f32 %v668, %v755
        %v781 = vmul.f32 %v669, %v760
        %v782 = vmul.f32 %v670, %v765
        %v783 = vld [vmem:[#allocation2] sm:$0xff]
        %v784 = vld [vmem:[#allocation2 + $0x8] sm:$0xff]
        %v785 = vld [vmem:[#allocation2 + $0x10] sm:$0xff]
        %v786 = vld [vmem:[#allocation2 + $0x18] sm:$0xff]
        %v787 = vld [vmem:[#allocation2 + $0x20] sm:$0xff]
        %v788 = vld [vmem:[#allocation2 + $0x28] sm:$0xff]
        %v789 = vld [vmem:[#allocation2 + $0x30] sm:$0xff]
        %v790 = vld [vmem:[#allocation2 + $0x38] sm:$0xff]
        %v791 = vld [vmem:[#allocation2 + $0x40] sm:$0xff]
        %v792 = vld [vmem:[#allocation2 + $0x48] sm:$0xff]
        %v793 = vld [vmem:[#allocation2 + $0x50] sm:$0xff]
        %v794 = vld [vmem:[#allocation2 + $0x58] sm:$0xff]
        %v795 = vld [vmem:[#allocation2 + $0x60] sm:$0xff]
        %v796 = vld [vmem:[#allocation2 + $0x68] sm:$0xff]
        %v797 = vld [vmem:[#allocation2 + $0x70] sm:$0xff]
        %v798 = vld [vmem:[#allocation2 + $0x78] sm:$0xff]
        %v799 = vpack.c.bf16 %v768, %v767
        %v800 = vpack.c.bf16 %v770, %v769
        %v801 = vpack.c.bf16 %v772, %v771
        %v802 = vpack.c.bf16 %v774, %v773
        %v803 = vpack.c.bf16 %v776, %v775
        %v804 = vpack.c.bf16 %v778, %v777
        %v805 = vpack.c.bf16 %v780, %v779
        %v806 = vpack.c.bf16 %v782, %v781
        %807 = vmatprep.subr.bf16.mxu0 0
        %808 = vmatpush1.bf16.msra.mxu0 %v799
        %809 = vmatprep.subr.bf16.mxu0 0
        %810 = vmatpush1.bf16.msra.mxu0 %v800
        %811 = vmatprep.subr.bf16.mxu0 0
        %812 = vmatpush1.bf16.msra.mxu0 %v801
        %813 = vmatprep.subr.bf16.mxu0 0
        %814 = vmatpush1.bf16.msra.mxu0 %v802
        %815 = vmatprep.subr.bf16.mxu0 0
        %816 = vmatpush1.bf16.msra.mxu0 %v803
        %817 = vmatprep.subr.bf16.mxu0 0
        %818 = vmatpush1.bf16.msra.mxu0 %v804
        %819 = vmatprep.subr.bf16.mxu0 0
        %820 = vmatpush1.bf16.msra.mxu0 %v805
        %821 = vmatprep.subr.bf16.mxu0 0
        %822 = vmatpush1.bf16.msra.mxu0 %v806
        %823 = vmatprep.subr.bf16.mxu0 0
        %824 = vmatpush1.bf16.msra.mxu0 0
        %825 = vmatprep.subr.bf16.mxu0 0
        %826 = vmatpush1.bf16.msra.mxu0 0
        %827 = vmatprep.subr.bf16.mxu0 0
        %828 = vmatpush1.bf16.msra.mxu0 0
        %829 = vmatprep.subr.bf16.mxu0 0
        %830 = vmatpush1.bf16.msra.mxu0 0
        %831 = vmatprep.subr.bf16.mxu0 0
        %832 = vmatpush1.bf16.msra.mxu0 0
        %833 = vmatprep.subr.bf16.mxu0 0
        %834 = vmatpush1.bf16.msra.mxu0 0
        %835 = vmatprep.subr.bf16.mxu0 0
        %836 = vmatpush1.bf16.msra.mxu0 0
        %837 = vmatprep.subr.bf16.mxu0 0
        %838 = vmatpush1.bf16.msra.mxu0 0
        %839 = vmatprep.mubr.bf16.mxu0 0
        %840 = vmatmul.mubr.bf16.gmra.mrb[0].mxu0 %v426
        %v841 = vpop.f32.mrb[0].mxu0
        %v842 = vadd.f32 0.0, %v841
        %v843 = vpop.f32.mrb[0].mxu0
        %v844 = vpop.f32.mrb[0].mxu0
        %v845 = vadd.f32 0.0, %v844
        %v846 = vpop.f32.mrb[0].mxu0
        %847 = vmatprep.mubr.bf16.mxu0 0
        %848 = vmatmul.mubr.bf16.gmra.mrb[0].mxu0 %v427
        %v849 = vpop.f32.mrb[0].mxu0
        %v850 = vadd.f32 0.0, %v849
        %v851 = vpop.f32.mrb[0].mxu0
        %v852 = vpop.f32.mrb[0].mxu0
        %v853 = vadd.f32 0.0, %v852
        %v854 = vpop.f32.mrb[0].mxu0
        %855 = vmatprep.mubr.bf16.mxu0 0
        %856 = vmatmul.mubr.bf16.gmra.mrb[0].mxu0 %v428
        %v857 = vpop.f32.mrb[0].mxu0
        %v858 = vadd.f32 0.0, %v857
        %v859 = vpop.f32.mrb[0].mxu0
        %v860 = vpop.f32.mrb[0].mxu0
        %v861 = vadd.f32 0.0, %v860
        %v862 = vpop.f32.mrb[0].mxu0
        %863 = vmatprep.mubr.bf16.mxu0 0
        %864 = vmatmul.mubr.bf16.gmra.mrb[0].mxu0 %v429
        %v865 = vpop.f32.mrb[0].mxu0
        %v866 = vadd.f32 0.0, %v865
        %v867 = vpop.f32.mrb[0].mxu0
        %v868 = vpop.f32.mrb[0].mxu0
        %v869 = vadd.f32 0.0, %v868
        %v870 = vpop.f32.mrb[0].mxu0
        %871 = vmatprep.mubr.bf16.mxu0 0
        %872 = vmatmul.mubr.bf16.gmra.mrb[0].mxu0 %v430
        %v873 = vpop.f32.mrb[0].mxu0
        %v874 = vadd.f32 0.0, %v873
        %v875 = vpop.f32.mrb[0].mxu0
        %v876 = vpop.f32.mrb[0].mxu0
        %v877 = vadd.f32 0.0, %v876
        %v878 = vpop.f32.mrb[0].mxu0
        %879 = vmatprep.mubr.bf16.mxu0 0
        %880 = vmatmul.mubr.bf16.gmra.mrb[0].mxu0 %v431
        %v881 = vpop.f32.mrb[0].mxu0
        %v882 = vadd.f32 0.0, %v881
        %v883 = vpop.f32.mrb[0].mxu0
        %v884 = vpop.f32.mrb[0].mxu0
        %v885 = vadd.f32 0.0, %v884
        %v886 = vpop.f32.mrb[0].mxu0
        %887 = vmatprep.mubr.bf16.mxu0 0
        %888 = vmatmul.mubr.bf16.gmra.mrb[0].mxu0 %v432
        %v889 = vpop.f32.mrb[0].mxu0
        %v890 = vadd.f32 0.0, %v889
        %v891 = vpop.f32.mrb[0].mxu0
        %v892 = vpop.f32.mrb[0].mxu0
        %v893 = vadd.f32 0.0, %v892
        %v894 = vpop.f32.mrb[0].mxu0
        %895 = vmatprep.mubr.bf16.mxu0 0
        %896 = vmatmul.mubr.bf16.gmra.mrb[0].mxu0 %v433
        %v897 = vpop.f32.mrb[0].mxu0
        %v898 = vadd.f32 0.0, %v897
        %v899 = vpop.f32.mrb[0].mxu0
        %v900 = vpop.f32.mrb[0].mxu0
        %v901 = vadd.f32 0.0, %v900
        %v902 = vpop.f32.mrb[0].mxu0
        %903 = vdwg.mxu0
        %v904 = vadd.f32 %v783, %v842
        %v905 = vadd.f32 %v784, %v845
        %v906 = vadd.f32 %v785, %v850
        %v907 = vadd.f32 %v786, %v853
        %v908 = vadd.f32 %v787, %v858
        %v909 = vadd.f32 %v788, %v861
        %v910 = vadd.f32 %v789, %v866
        %v911 = vadd.f32 %v790, %v869
        %v912 = vadd.f32 %v791, %v874
        %v913 = vadd.f32 %v792, %v877
        %v914 = vadd.f32 %v793, %v882
        %v915 = vadd.f32 %v794, %v885
        %v916 = vadd.f32 %v795, %v890
        %v917 = vadd.f32 %v796, %v893
        %v918 = vadd.f32 %v797, %v898
        %v919 = vadd.f32 %v798, %v901
        %vm920 = vcmask 64512
        %921 = vst.msk [vmem:[#allocation2] sm:$0xff] %vm920, %v904
        %922 = vst.msk [vmem:[#allocation2 + $0x8] sm:$0xff] %vm920, %v905
        %923 = vst.msk [vmem:[#allocation2 + $0x10] sm:$0xff] %vm920, %v906
        %924 = vst.msk [vmem:[#allocation2 + $0x18] sm:$0xff] %vm920, %v907
        %925 = vst.msk [vmem:[#allocation2 + $0x20] sm:$0xff] %vm920, %v908
        %926 = vst.msk [vmem:[#allocation2 + $0x28] sm:$0xff] %vm920, %v909
        %927 = vst.msk [vmem:[#allocation2 + $0x30] sm:$0xff] %vm920, %v910
        %928 = vst.msk [vmem:[#allocation2 + $0x38] sm:$0xff] %vm920, %v911
        %929 = vst.msk [vmem:[#allocation2 + $0x40] sm:$0xff] %vm920, %v912
        %930 = vst.msk [vmem:[#allocation2 + $0x48] sm:$0xff] %vm920, %v913
        %931 = vst.msk [vmem:[#allocation2 + $0x50] sm:$0xff] %vm920, %v914
        %932 = vst.msk [vmem:[#allocation2 + $0x58] sm:$0xff] %vm920, %v915
        %933 = vst.msk [vmem:[#allocation2 + $0x60] sm:$0xff] %vm920, %v916
        %934 = vst.msk [vmem:[#allocation2 + $0x68] sm:$0xff] %vm920, %v917
        %935 = vst.msk [vmem:[#allocation2 + $0x70] sm:$0xff] %vm920, %v918
        %936 = vst.msk [vmem:[#allocation2 + $0x78] sm:$0xff] %vm920, %v919
        %v937 = vld [vmem:[#allocation3] sm:$0xff]
        %v938 = vld [vmem:[#allocation3 + $0x8] sm:$0xff]
        %v939 = vld [vmem:[#allocation3 + $0x10] sm:$0xff]
        %v940 = vld [vmem:[#allocation3 + $0x18] sm:$0xff]
        %v941 = vld [vmem:[#allocation3 + $0x20] sm:$0xff]
        %v942 = vld [vmem:[#allocation3 + $0x28] sm:$0xff]
        %v943 = vld [vmem:[#allocation3 + $0x30] sm:$0xff]
        %v944 = vld [vmem:[#allocation3 + $0x38] sm:$0xff]
        %v945 = vld [vmem:[#allocation3 + $0x40] sm:$0xff]
        %v946 = vld [vmem:[#allocation3 + $0x48] sm:$0xff]
        %v947 = vld [vmem:[#allocation3 + $0x50] sm:$0xff]
        %v948 = vld [vmem:[#allocation3 + $0x58] sm:$0xff]
        %v949 = vld [vmem:[#allocation3 + $0x60] sm:$0xff]
        %v950 = vld [vmem:[#allocation3 + $0x68] sm:$0xff]
        %v951 = vld [vmem:[#allocation3 + $0x70] sm:$0xff]
        %v952 = vld [vmem:[#allocation3 + $0x78] sm:$0xff]
        %v953 = vunpack.c.l.bf16 %v426
        %v954 = vunpack.c.h.bf16 %v426
        %v955 = vunpack.c.l.bf16 %v427
        %v956 = vunpack.c.h.bf16 %v427
        %v957 = vunpack.c.l.bf16 %v428
        %v958 = vunpack.c.h.bf16 %v428
        %v959 = vunpack.c.l.bf16 %v429
        %v960 = vunpack.c.h.bf16 %v429
        %v961 = vunpack.c.l.bf16 %v430
        %v962 = vunpack.c.h.bf16 %v430
        %v963 = vunpack.c.l.bf16 %v431
        %v964 = vunpack.c.h.bf16 %v431
        %v965 = vunpack.c.l.bf16 %v432
        %v966 = vunpack.c.h.bf16 %v432
        %v967 = vunpack.c.l.bf16 %v433
        %v968 = vunpack.c.h.bf16 %v433
        %969 = vadd.xlane.f32.xlu0 %v953
        %v970 = vpop.xlane.xlu0 %969
        %971 = vadd.xlane.f32.xlu0 %v954
        %v972 = vpop.xlane.xlu0 %971
        %973 = vadd.xlane.f32.xlu0 %v955
        %v974 = vpop.xlane.xlu0 %973
        %975 = vadd.xlane.f32.xlu0 %v956
        %v976 = vpop.xlane.xlu0 %975
        %977 = vadd.xlane.f32.xlu0 %v957
        %v978 = vpop.xlane.xlu0 %977
        %979 = vadd.xlane.f32.xlu0 %v958
        %v980 = vpop.xlane.xlu0 %979
        %981 = vadd.xlane.f32.xlu0 %v959
        %v982 = vpop.xlane.xlu0 %981
        %983 = vadd.xlane.f32.xlu0 %v960
        %v984 = vpop.xlane.xlu0 %983
        %985 = vadd.xlane.f32.xlu0 %v961
        %v986 = vpop.xlane.xlu0 %985
        %987 = vadd.xlane.f32.xlu0 %v962
        %v988 = vpop.xlane.xlu0 %987
        %989 = vadd.xlane.f32.xlu0 %v963
        %v990 = vpop.xlane.xlu0 %989
        %991 = vadd.xlane.f32.xlu0 %v964
        %v992 = vpop.xlane.xlu0 %991
        %993 = vadd.xlane.f32.xlu0 %v965
        %v994 = vpop.xlane.xlu0 %993
        %995 = vadd.xlane.f32.xlu0 %v966
        %v996 = vpop.xlane.xlu0 %995
        %997 = vadd.xlane.f32.xlu0 %v967
        %v998 = vpop.xlane.xlu0 %997
        %999 = vadd.xlane.f32.xlu0 %v968
        %v1000 = vpop.xlane.xlu0 %999
        %v1001 = vadd.f32 %v937, %v970
        %v1002 = vadd.f32 %v938, %v972
        %v1003 = vadd.f32 %v939, %v974
        %v1004 = vadd.f32 %v940, %v976
        %v1005 = vadd.f32 %v941, %v978
        %v1006 = vadd.f32 %v942, %v980
        %v1007 = vadd.f32 %v943, %v982
        %v1008 = vadd.f32 %v944, %v984
        %v1009 = vadd.f32 %v945, %v986
        %v1010 = vadd.f32 %v946, %v988
        %v1011 = vadd.f32 %v947, %v990
        %v1012 = vadd.f32 %v948, %v992
        %v1013 = vadd.f32 %v949, %v994
        %v1014 = vadd.f32 %v950, %v996
        %v1015 = vadd.f32 %v951, %v998
        %v1016 = vadd.f32 %v952, %v1000
        %vm1017 = vcmask 7168
        %1018 = vst.msk [vmem:[#allocation3] sm:$0xff] %vm1017, %v1001
        %1019 = vst.msk [vmem:[#allocation3 + $0x8] sm:$0xff] %vm1017, %v1002
        %1020 = vst.msk [vmem:[#allocation3 + $0x10] sm:$0xff] %vm1017, %v1003
        %1021 = vst.msk [vmem:[#allocation3 + $0x18] sm:$0xff] %vm1017, %v1004
        %1022 = vst.msk [vmem:[#allocation3 + $0x20] sm:$0xff] %vm1017, %v1005
        %1023 = vst.msk [vmem:[#allocation3 + $0x28] sm:$0xff] %vm1017, %v1006
        %1024 = vst.msk [vmem:[#allocation3 + $0x30] sm:$0xff] %vm1017, %v1007
        %1025 = vst.msk [vmem:[#allocation3 + $0x38] sm:$0xff] %vm1017, %v1008
        %1026 = vst.msk [vmem:[#allocation3 + $0x40] sm:$0xff] %vm1017, %v1009
        %1027 = vst.msk [vmem:[#allocation3 + $0x48] sm:$0xff] %vm1017, %v1010
        %1028 = vst.msk [vmem:[#allocation3 + $0x50] sm:$0xff] %vm1017, %v1011
        %1029 = vst.msk [vmem:[#allocation3 + $0x58] sm:$0xff] %vm1017, %v1012
        %1030 = vst.msk [vmem:[#allocation3 + $0x60] sm:$0xff] %vm1017, %v1013
        %1031 = vst.msk [vmem:[#allocation3 + $0x68] sm:$0xff] %vm1017, %v1014
        %1032 = vst.msk [vmem:[#allocation3 + $0x70] sm:$0xff] %vm1017, %v1015
        %1033 = vst.msk [vmem:[#allocation3 + $0x78] sm:$0xff] %vm1017, %v1016
        %p1034 = scmp.eq.s32.totalorder %s22, 1
        // Predicated region
        $region87: #{appnp_forward.3} parent=77 // pred_check
          %p1035 = pneg %p1034
        $region88: #{appnp_forward.3} parent=77 // pred_check_branch
          %1037 = sbr.rel (%p1035) target = $region90
        $region89: #{appnp_forward.3} parent=77 // pred_region
          %v1038 = vld [vmem:[%s369] sm:$0xff]
          %v1039 = vld [vmem:[%s369 + $0x8] sm:$0xff]
          %v1040 = vld [vmem:[%s369 + $0x10] sm:$0xff]
          %v1041 = vld [vmem:[%s369 + $0x18] sm:$0xff]
          %v1042 = vld [vmem:[%s369 + $0x20] sm:$0xff]
          %v1043 = vld [vmem:[%s369 + $0x28] sm:$0xff]
          %v1044 = vld [vmem:[%s369 + $0x30] sm:$0xff]
          %v1045 = vld [vmem:[%s369 + $0x38] sm:$0xff]
          %v1046 = vld [vmem:[%s369 + $0x40] sm:$0xff]
          %v1047 = vld [vmem:[%s369 + $0x48] sm:$0xff]
          %v1048 = vld [vmem:[%s369 + $0x50] sm:$0xff]
          %v1049 = vld [vmem:[%s369 + $0x58] sm:$0xff]
          %v1050 = vld [vmem:[%s369 + $0x60] sm:$0xff]
          %v1051 = vld [vmem:[%s369 + $0x68] sm:$0xff]
          %v1052 = vld [vmem:[%s369 + $0x70] sm:$0xff]
          %v1053 = vld [vmem:[%s369 + $0x78] sm:$0xff]
          %v1054 = vld [vmem:[%s3] sm:$0xff]
          %v1055 = vld [vmem:[%s3 + $0x8] sm:$0xff]
          %v1056 = vld [vmem:[%s3 + $0x10] sm:$0xff]
          %v1057 = vld [vmem:[%s3 + $0x18] sm:$0xff]
          %v1058 = vld [vmem:[%s4] sm:$0x1]
          %v1060 = vlaneseq
          %v1061 = vshrl.u32 %v1060, 7
          %v1062 = vsub.s32 0, %v1061
          %v1063 = vrot.slane %v1058, %v1062
          %v1066 = vsel %vm461, %v1038, 0
          %v1069 = vsel %vm461, %v1039, 0
          %v1072 = vsel %vm461, %v1040, 0
          %v1075 = vsel %vm461, %v1041, 0
          %v1078 = vsel %vm461, %v1042, 0
          %v1081 = vsel %vm461, %v1043, 0
          %v1084 = vsel %vm461, %v1044, 0
          %v1087 = vsel %vm461, %v1045, 0
          %v1090 = vsel %vm461, %v1046, 0
          %v1093 = vsel %vm461, %v1047, 0
          %v1096 = vsel %vm461, %v1048, 0
          %v1099 = vsel %vm461, %v1049, 0
          %v1102 = vsel %vm461, %v1050, 0
          %v1105 = vsel %vm461, %v1051, 0
          %v1108 = vsel %vm461, %v1052, 0
          %v1111 = vsel %vm461, %v1053, 0
          %1113 = vmatprep.subr.mxu0 0.0
          %1114 = vmatpush1.msra.mxu0 %v1054
          %1115 = vmatprep.subr.mxu0 0.0
          %1116 = vmatpush1.msra.mxu0 %v1055
          %1117 = vmatprep.subr.mxu0 0.0
          %1118 = vmatpush1.msra.mxu0 %v1056
          %1119 = vmatprep.subr.mxu0 0.0
          %1120 = vmatpush1.msra.mxu0 %v1057
          %1121 = vmatprep.subr.mxu0 0.0
          %1122 = vmatpush1.msra.mxu0 0.0
          %1123 = vmatprep.subr.mxu0 0.0
          %1124 = vmatpush1.msra.mxu0 0.0
          %1125 = vmatprep.subr.mxu0 0.0
          %1126 = vmatpush1.msra.mxu0 0.0
          %1127 = vmatprep.subr.mxu0 0.0
          %1128 = vmatpush1.msra.mxu0 0.0
          %1129 = vmatprep.subr.mxu0 0.0
          %1130 = vmatpush1.msra.mxu0 0.0
          %1131 = vmatprep.subr.mxu0 0.0
          %1132 = vmatpush1.msra.mxu0 0.0
          %1133 = vmatprep.subr.mxu0 0.0
          %1134 = vmatpush1.msra.mxu0 0.0
          %1135 = vmatprep.subr.mxu0 0.0
          %1136 = vmatpush1.msra.mxu0 0.0
          %1137 = vmatprep.subr.mxu0 0.0
          %1138 = vmatpush1.msra.mxu0 0.0
          %1139 = vmatprep.subr.mxu0 0.0
          %1140 = vmatpush1.msra.mxu0 0.0
          %1141 = vmatprep.subr.mxu0 0.0
          %1142 = vmatpush1.msra.mxu0 0.0
          %1143 = vmatprep.subr.mxu0 0.0
          %1144 = vmatpush1.msra.mxu0 0.0
          %1145 = vmatprep.subr.mxu0 0.0
          %1146 = vmatpush1.msra.mxu0 0.0
          %1147 = vmatprep.subr.mxu0 0.0
          %1148 = vmatpush1.msra.mxu0 0.0
          %1149 = vmatprep.subr.mxu0 0.0
          %1150 = vmatpush1.msra.mxu0 0.0
          %1151 = vmatprep.subr.mxu0 0.0
          %1152 = vmatpush1.msra.mxu0 0.0
          %1153 = vmatprep.subr.mxu0 0.0
          %1154 = vmatpush1.msra.mxu0 0.0
          %1155 = vmatprep.subr.mxu0 0.0
          %1156 = vmatpush1.msra.mxu0 0.0
          %1157 = vmatprep.subr.mxu0 0.0
          %1158 = vmatpush1.msra.mxu0 0.0
          %1159 = vmatprep.subr.mxu0 0.0
          %1160 = vmatpush1.msra.mxu0 0.0
          %1161 = vmatprep.subr.mxu0 0.0
          %1162 = vmatpush1.msra.mxu0 0.0
          %1163 = vmatprep.subr.mxu0 0.0
          %1164 = vmatpush1.msra.mxu0 0.0
          %1165 = vmatprep.subr.mxu0 0.0
          %1166 = vmatpush1.msra.mxu0 0.0
          %1167 = vmatprep.subr.mxu0 0.0
          %1168 = vmatpush1.msra.mxu0 0.0
          %1169 = vmatprep.subr.mxu0 0.0
          %1170 = vmatpush1.msra.mxu0 0.0
          %1171 = vmatprep.subr.mxu0 0.0
          %1172 = vmatpush1.msra.mxu0 0.0
          %1173 = vmatprep.subr.mxu0 0.0
          %1174 = vmatpush1.msra.mxu0 0.0
          %1175 = vmatprep.subr.mxu0 0.0
          %1176 = vmatpush1.msra.mxu0 0.0
          %1177 = vmatprep.mubr.f32.mxu0 0.0
          %1178 = vmatmul.mubr.f32.gmra.mrb[0].mxu0 %v1066
          %v1179 = vpop.f32.mrb[0].mxu0
          %v1180 = vadd.f32 %v1063, %v1179
          %v1181 = vpop.f32.mrb[0].mxu0
          %1182 = vmatprep.mubr.f32.mxu0 0.0
          %1183 = vmatmul.mubr.f32.gmra.mrb[0].mxu0 %v1069
          %v1184 = vpop.f32.mrb[0].mxu0
          %v1185 = vadd.f32 %v1063, %v1184
          %v1186 = vpop.f32.mrb[0].mxu0
          %1187 = vmatprep.mubr.f32.mxu0 0.0
          %1188 = vmatmul.mubr.f32.gmra.mrb[0].mxu0 %v1072
          %v1189 = vpop.f32.mrb[0].mxu0
          %v1190 = vadd.f32 %v1063, %v1189
          %v1191 = vpop.f32.mrb[0].mxu0
          %1192 = vmatprep.mubr.f32.mxu0 0.0
          %1193 = vmatmul.mubr.f32.gmra.mrb[0].mxu0 %v1075
          %v1194 = vpop.f32.mrb[0].mxu0
          %v1195 = vadd.f32 %v1063, %v1194
          %v1196 = vpop.f32.mrb[0].mxu0
          %1197 = vmatprep.mubr.f32.mxu0 0.0
          %1198 = vmatmul.mubr.f32.gmra.mrb[0].mxu0 %v1078
          %v1199 = vpop.f32.mrb[0].mxu0
          %v1200 = vadd.f32 %v1063, %v1199
          %v1201 = vpop.f32.mrb[0].mxu0
          %1202 = vmatprep.mubr.f32.mxu0 0.0
          %1203 = vmatmul.mubr.f32.gmra.mrb[0].mxu0 %v1081
          %v1204 = vpop.f32.mrb[0].mxu0
          %v1205 = vadd.f32 %v1063, %v1204
          %v1206 = vpop.f32.mrb[0].mxu0
          %1207 = vmatprep.mubr.f32.mxu0 0.0
          %1208 = vmatmul.mubr.f32.gmra.mrb[0].mxu0 %v1084
          %v1209 = vpop.f32.mrb[0].mxu0
          %v1210 = vadd.f32 %v1063, %v1209
          %v1211 = vpop.f32.mrb[0].mxu0
          %1212 = vmatprep.mubr.f32.mxu0 0.0
          %1213 = vmatmul.mubr.f32.gmra.mrb[0].mxu0 %v1087
          %v1214 = vpop.f32.mrb[0].mxu0
          %v1215 = vadd.f32 %v1063, %v1214
          %v1216 = vpop.f32.mrb[0].mxu0
          %1217 = vmatprep.mubr.f32.mxu0 0.0
          %1218 = vmatmul.mubr.f32.gmra.mrb[0].mxu0 %v1090
          %v1219 = vpop.f32.mrb[0].mxu0
          %v1220 = vadd.f32 %v1063, %v1219
          %v1221 = vpop.f32.mrb[0].mxu0
          %1222 = vmatprep.mubr.f32.mxu0 0.0
          %1223 = vmatmul.mubr.f32.gmra.mrb[0].mxu0 %v1093
          %v1224 = vpop.f32.mrb[0].mxu0
          %v1225 = vadd.f32 %v1063, %v1224
          %v1226 = vpop.f32.mrb[0].mxu0
          %1227 = vmatprep.mubr.f32.mxu0 0.0
          %1228 = vmatmul.mubr.f32.gmra.mrb[0].mxu0 %v1096
          %v1229 = vpop.f32.mrb[0].mxu0
          %v1230 = vadd.f32 %v1063, %v1229
          %v1231 = vpop.f32.mrb[0].mxu0
          %1232 = vmatprep.mubr.f32.mxu0 0.0
          %1233 = vmatmul.mubr.f32.gmra.mrb[0].mxu0 %v1099
          %v1234 = vpop.f32.mrb[0].mxu0
          %v1235 = vadd.f32 %v1063, %v1234
          %v1236 = vpop.f32.mrb[0].mxu0
          %1237 = vmatprep.mubr.f32.mxu0 0.0
          %1238 = vmatmul.mubr.f32.gmra.mrb[0].mxu0 %v1102
          %v1239 = vpop.f32.mrb[0].mxu0
          %v1240 = vadd.f32 %v1063, %v1239
          %v1241 = vpop.f32.mrb[0].mxu0
          %1242 = vmatprep.mubr.f32.mxu0 0.0
          %1243 = vmatmul.mubr.f32.gmra.mrb[0].mxu0 %v1105
          %v1244 = vpop.f32.mrb[0].mxu0
          %v1245 = vadd.f32 %v1063, %v1244
          %v1246 = vpop.f32.mrb[0].mxu0
          %1247 = vmatprep.mubr.f32.mxu0 0.0
          %1248 = vmatmul.mubr.f32.gmra.mrb[0].mxu0 %v1108
          %v1249 = vpop.f32.mrb[0].mxu0
          %v1250 = vadd.f32 %v1063, %v1249
          %v1251 = vpop.f32.mrb[0].mxu0
          %1252 = vmatprep.mubr.f32.mxu0 0.0
          %1253 = vmatmul.mubr.f32.gmra.mrb[0].mxu0 %v1111
          %v1254 = vpop.f32.mrb[0].mxu0
          %v1255 = vadd.f32 %v1063, %v1254
          %v1256 = vpop.f32.mrb[0].mxu0
          %1257 = vdwg.mxu0
          %v1258 = vmax.f32 %v1180, 0.0
          %v1259 = vmax.f32 %v1185, 0.0
          %v1260 = vmax.f32 %v1190, 0.0
          %v1261 = vmax.f32 %v1195, 0.0
          %v1262 = vmax.f32 %v1200, 0.0
          %v1263 = vmax.f32 %v1205, 0.0
          %v1264 = vmax.f32 %v1210, 0.0
          %v1265 = vmax.f32 %v1215, 0.0
          %v1266 = vmax.f32 %v1220, 0.0
          %v1267 = vmax.f32 %v1225, 0.0
          %v1268 = vmax.f32 %v1230, 0.0
          %v1269 = vmax.f32 %v1235, 0.0
          %v1270 = vmax.f32 %v1240, 0.0
          %v1271 = vmax.f32 %v1245, 0.0
          %v1272 = vmax.f32 %v1250, 0.0
          %v1273 = vmax.f32 %v1255, 0.0
          %v1274 = vld [vmem:[#allocation3] sm:$0xff]
          %v1275 = vld [vmem:[#allocation3 + $0x8] sm:$0xff]
          %v1276 = vld [vmem:[#allocation3 + $0x10] sm:$0xff]
          %v1277 = vld [vmem:[#allocation3 + $0x18] sm:$0xff]
          %v1278 = vld [vmem:[#allocation3 + $0x20] sm:$0xff]
          %v1279 = vld [vmem:[#allocation3 + $0x28] sm:$0xff]
          %v1280 = vld [vmem:[#allocation3 + $0x30] sm:$0xff]
          %v1281 = vld [vmem:[#allocation3 + $0x38] sm:$0xff]
          %v1282 = vld [vmem:[#allocation3 + $0x40] sm:$0xff]
          %v1283 = vld [vmem:[#allocation3 + $0x48] sm:$0xff]
          %v1284 = vld [vmem:[#allocation3 + $0x50] sm:$0xff]
          %v1285 = vld [vmem:[#allocation3 + $0x58] sm:$0xff]
          %v1286 = vld [vmem:[#allocation3 + $0x60] sm:$0xff]
          %v1287 = vld [vmem:[#allocation3 + $0x68] sm:$0xff]
          %v1288 = vld [vmem:[#allocation3 + $0x70] sm:$0xff]
          %v1289 = vld [vmem:[#allocation3 + $0x78] sm:$0xff]
          %v1290 = vmax.f32 %v1274, 1.0
          %v1291 = vmax.f32 %v1275, 1.0
          %v1292 = vmax.f32 %v1276, 1.0
          %v1293 = vmax.f32 %v1277, 1.0
          %v1294 = vmax.f32 %v1278, 1.0
          %v1295 = vmax.f32 %v1279, 1.0
          %v1296 = vmax.f32 %v1280, 1.0
          %v1297 = vmax.f32 %v1281, 1.0
          %v1298 = vmax.f32 %v1282, 1.0
          %v1299 = vmax.f32 %v1283, 1.0
          %v1300 = vmax.f32 %v1284, 1.0
          %v1301 = vmax.f32 %v1285, 1.0
          %v1302 = vmax.f32 %v1286, 1.0
          %v1303 = vmax.f32 %v1287, 1.0
          %v1304 = vmax.f32 %v1288, 1.0
          %v1305 = vmax.f32 %v1289, 1.0
          %v1306 = vrsqrt.pop %v1290
          %v1307 = vrsqrt.pop %v1291
          %v1308 = vrsqrt.pop %v1292
          %v1309 = vrsqrt.pop %v1293
          %v1310 = vrsqrt.pop %v1294
          %v1311 = vrsqrt.pop %v1295
          %v1312 = vrsqrt.pop %v1296
          %v1313 = vrsqrt.pop %v1297
          %v1314 = vrsqrt.pop %v1298
          %v1315 = vrsqrt.pop %v1299
          %v1316 = vrsqrt.pop %v1300
          %v1317 = vrsqrt.pop %v1301
          %v1318 = vrsqrt.pop %v1302
          %v1319 = vrsqrt.pop %v1303
          %v1320 = vrsqrt.pop %v1304
          %v1321 = vrsqrt.pop %v1305
          %v1322 = vmul.f32 %v1306, 0.8
          %v1323 = vmul.f32 %v1307, 0.8
          %v1324 = vmul.f32 %v1308, 0.8
          %v1325 = vmul.f32 %v1309, 0.8
          %v1326 = vmul.f32 %v1310, 0.8
          %v1327 = vmul.f32 %v1311, 0.8
          %v1328 = vmul.f32 %v1312, 0.8
          %v1329 = vmul.f32 %v1313, 0.8
          %v1330 = vmul.f32 %v1314, 0.8
          %v1331 = vmul.f32 %v1315, 0.8
          %v1332 = vmul.f32 %v1316, 0.8
          %v1333 = vmul.f32 %v1317, 0.8
          %v1334 = vmul.f32 %v1318, 0.8
          %v1335 = vmul.f32 %v1319, 0.8
          %v1336 = vmul.f32 %v1320, 0.8
          %v1337 = vmul.f32 %v1321, 0.8
          %v1338 = vld [vmem:[#allocation2] sm:$0xff]
          %v1339 = vld [vmem:[#allocation2 + $0x8] sm:$0xff]
          %v1340 = vld [vmem:[#allocation2 + $0x10] sm:$0xff]
          %v1341 = vld [vmem:[#allocation2 + $0x18] sm:$0xff]
          %v1342 = vld [vmem:[#allocation2 + $0x20] sm:$0xff]
          %v1343 = vld [vmem:[#allocation2 + $0x28] sm:$0xff]
          %v1344 = vld [vmem:[#allocation2 + $0x30] sm:$0xff]
          %v1345 = vld [vmem:[#allocation2 + $0x38] sm:$0xff]
          %v1346 = vld [vmem:[#allocation2 + $0x40] sm:$0xff]
          %v1347 = vld [vmem:[#allocation2 + $0x48] sm:$0xff]
          %v1348 = vld [vmem:[#allocation2 + $0x50] sm:$0xff]
          %v1349 = vld [vmem:[#allocation2 + $0x58] sm:$0xff]
          %v1350 = vld [vmem:[#allocation2 + $0x60] sm:$0xff]
          %v1351 = vld [vmem:[#allocation2 + $0x68] sm:$0xff]
          %v1352 = vld [vmem:[#allocation2 + $0x70] sm:$0xff]
          %v1353 = vld [vmem:[#allocation2 + $0x78] sm:$0xff]
          %1355 = vset.pattern.permute.xlu0 0
          %1356 = vperm.xlu0 %1355, %v1322
          %v1357 = vpop.permute.xlu0 %1356
          %1360 = vset.pattern.permute.xlu0 0
          %1361 = vperm.xlu0 %1360, %v1323
          %v1362 = vpop.permute.xlu0 %1361
          %1365 = vset.pattern.permute.xlu0 0
          %1366 = vperm.xlu0 %1365, %v1324
          %v1367 = vpop.permute.xlu0 %1366
          %1370 = vset.pattern.permute.xlu0 0
          %1371 = vperm.xlu0 %1370, %v1325
          %v1372 = vpop.permute.xlu0 %1371
          %1375 = vset.pattern.permute.xlu0 0
          %1376 = vperm.xlu0 %1375, %v1326
          %v1377 = vpop.permute.xlu0 %1376
          %1380 = vset.pattern.permute.xlu0 0
          %1381 = vperm.xlu0 %1380, %v1327
          %v1382 = vpop.permute.xlu0 %1381
          %1385 = vset.pattern.permute.xlu0 0
          %1386 = vperm.xlu0 %1385, %v1328
          %v1387 = vpop.permute.xlu0 %1386
          %1390 = vset.pattern.permute.xlu0 0
          %1391 = vperm.xlu0 %1390, %v1329
          %v1392 = vpop.permute.xlu0 %1391
          %1395 = vset.pattern.permute.xlu0 0
          %1396 = vperm.xlu0 %1395, %v1330
          %v1397 = vpop.permute.xlu0 %1396
          %1400 = vset.pattern.permute.xlu0 0
          %1401 = vperm.xlu0 %1400, %v1331
          %v1402 = vpop.permute.xlu0 %1401
          %1405 = vset.pattern.permute.xlu0 0
          %1406 = vperm.xlu0 %1405, %v1332
          %v1407 = vpop.permute.xlu0 %1406
          %1410 = vset.pattern.permute.xlu0 0
          %1411 = vperm.xlu0 %1410, %v1333
          %v1412 = vpop.permute.xlu0 %1411
          %1415 = vset.pattern.permute.xlu0 0
          %1416 = vperm.xlu0 %1415, %v1334
          %v1417 = vpop.permute.xlu0 %1416
          %1420 = vset.pattern.permute.xlu0 0
          %1421 = vperm.xlu0 %1420, %v1335
          %v1422 = vpop.permute.xlu0 %1421
          %1425 = vset.pattern.permute.xlu0 0
          %1426 = vperm.xlu0 %1425, %v1336
          %v1427 = vpop.permute.xlu0 %1426
          %1430 = vset.pattern.permute.xlu0 0
          %1431 = vperm.xlu0 %1430, %v1337
          %v1432 = vpop.permute.xlu0 %1431
          %v1434 = vmul.f32 %v1338, %v1357
          %v1435 = vmul.f32 %v1339, %v1362
          %v1436 = vmul.f32 %v1340, %v1367
          %v1437 = vmul.f32 %v1341, %v1372
          %v1438 = vmul.f32 %v1342, %v1377
          %v1439 = vmul.f32 %v1343, %v1382
          %v1440 = vmul.f32 %v1344, %v1387
          %v1441 = vmul.f32 %v1345, %v1392
          %v1442 = vmul.f32 %v1346, %v1397
          %v1443 = vmul.f32 %v1347, %v1402
          %v1444 = vmul.f32 %v1348, %v1407
          %v1445 = vmul.f32 %v1349, %v1412
          %v1446 = vmul.f32 %v1350, %v1417
          %v1447 = vmul.f32 %v1351, %v1422
          %v1448 = vmul.f32 %v1352, %v1427
          %v1449 = vmul.f32 %v1353, %v1432
          %v1450 = vmul.f32 %v1258, 0.2
          %v1451 = vmul.f32 %v1259, 0.2
          %v1452 = vmul.f32 %v1260, 0.2
          %v1453 = vmul.f32 %v1261, 0.2
          %v1454 = vmul.f32 %v1262, 0.2
          %v1455 = vmul.f32 %v1263, 0.2
          %v1456 = vmul.f32 %v1264, 0.2
          %v1457 = vmul.f32 %v1265, 0.2
          %v1458 = vmul.f32 %v1266, 0.2
          %v1459 = vmul.f32 %v1267, 0.2
          %v1460 = vmul.f32 %v1268, 0.2
          %v1461 = vmul.f32 %v1269, 0.2
          %v1462 = vmul.f32 %v1270, 0.2
          %v1463 = vmul.f32 %v1271, 0.2
          %v1464 = vmul.f32 %v1272, 0.2
          %v1465 = vmul.f32 %v1273, 0.2
          %v1466 = vadd.f32 %v1434, %v1450
          %v1467 = vadd.f32 %v1435, %v1451
          %v1468 = vadd.f32 %v1436, %v1452
          %v1469 = vadd.f32 %v1437, %v1453
          %v1470 = vadd.f32 %v1438, %v1454
          %v1471 = vadd.f32 %v1439, %v1455
          %v1472 = vadd.f32 %v1440, %v1456
          %v1473 = vadd.f32 %v1441, %v1457
          %v1474 = vadd.f32 %v1442, %v1458
          %v1475 = vadd.f32 %v1443, %v1459
          %v1476 = vadd.f32 %v1444, %v1460
          %v1477 = vadd.f32 %v1445, %v1461
          %v1478 = vadd.f32 %v1446, %v1462
          %v1479 = vadd.f32 %v1447, %v1463
          %v1480 = vadd.f32 %v1448, %v1464
          %v1481 = vadd.f32 %v1449, %v1465
          %1482 = vst.msk [vmem:[%s381] sm:$0xff] %vm920, %v1466
          %1483 = vst.msk [vmem:[%s381 + $0x8] sm:$0xff] %vm920, %v1467
          %1484 = vst.msk [vmem:[%s381 + $0x10] sm:$0xff] %vm920, %v1468
          %1485 = vst.msk [vmem:[%s381 + $0x18] sm:$0xff] %vm920, %v1469
          %1486 = vst.msk [vmem:[%s381 + $0x20] sm:$0xff] %vm920, %v1470
          %1487 = vst.msk [vmem:[%s381 + $0x28] sm:$0xff] %vm920, %v1471
          %1488 = vst.msk [vmem:[%s381 + $0x30] sm:$0xff] %vm920, %v1472
          %1489 = vst.msk [vmem:[%s381 + $0x38] sm:$0xff] %vm920, %v1473
          %1490 = vst.msk [vmem:[%s381 + $0x40] sm:$0xff] %vm920, %v1474
          %1491 = vst.msk [vmem:[%s381 + $0x48] sm:$0xff] %vm920, %v1475
          %1492 = vst.msk [vmem:[%s381 + $0x50] sm:$0xff] %vm920, %v1476
          %1493 = vst.msk [vmem:[%s381 + $0x58] sm:$0xff] %vm920, %v1477
          %1494 = vst.msk [vmem:[%s381 + $0x60] sm:$0xff] %vm920, %v1478
          %1495 = vst.msk [vmem:[%s381 + $0x68] sm:$0xff] %vm920, %v1479
          %1496 = vst.msk [vmem:[%s381 + $0x70] sm:$0xff] %vm920, %v1480
          %1497 = vst.msk [vmem:[%s381 + $0x78] sm:$0xff] %vm920, %v1481
        $region90: #{appnp_forward.3} parent=77 // pred_fallthru
          _
        %s1498 = smul.u32 16, %s21
        %p1499 = scmp.lt.s32.totalorder %s1498, 31
        %s1500 = scalar_select %p1499, %s1498, 31
        %s1501 = smul.addr %s1500, 8
        %s1502 = scalar_lea.vmem %s6, %s1501
        // Predicated region
        $region91: #{appnp_forward.3} parent=77 // pred_check
          %p1503 = pneg %p195
        $region92: #{appnp_forward.3} parent=77 // pred_check_branch
          %1505 = sbr.rel (%p1503) target = $region94
        $region93: #{appnp_forward.3} parent=77 // pred_region
          %s1506 = smul.u32 16, %s21
        $region94: #{appnp_forward.3} parent=77 // pred_fallthru
          _
      $region78: #{appnp_forward.3} parent=5 // pred_fallthru
        _
      %p1507 = scmp.le.s32.totalorder 2, %s12
      // Predicated region
      $region95: #{appnp_forward.3} parent=5 // pred_check
        %p1508 = pneg %p1507
      $region96: #{appnp_forward.3} parent=5 // pred_check_branch
        %1510 = sbr.rel (%p1508) target = $region98
      $region97: #{appnp_forward.3} parent=5 // pred_region
        %s1511 = ssub.s32 %s12, 2
        // Predicated region
        $region99: #{appnp_forward.3} parent=97 // pred_check
          %p1512 = pneg %p201
        $region100: #{appnp_forward.3} parent=97 // pred_check_branch
          %1514 = sbr.rel (%p1512) target = $region102
        $region101: #{appnp_forward.3} parent=97 // pred_region
          %s1515 = smul.u32 16, %s23
          %p1516 = scmp.lt.s32.totalorder %s1515, 31
          %s1517 = scalar_select %p1516, %s1515, 31
          %s1518 = smul.addr %s1517, 8
          %s1519 = scalar_lea.vmem %s6, %s1518
        $region102: #{appnp_forward.3} parent=97 // pred_fallthru
          _
      $region98: #{appnp_forward.3} parent=5 // pred_fallthru
        _
    $region6: #{appnp_forward.3} parent=1 // loop_footer
      %s16 = sadd.s32 1, %s12
    $region7: #{appnp_forward.3} parent=1 // loop_footer_branch
      %11 = sbr.rel target = $region3
    $region8: #{appnp_forward.3} parent=1 // loop_exit
      _

</llo_original>
